<compile_context>
chip_gen: v5e
topology: v5e:2x2
jax: 0.10.0
libtpu: 0.0.40
codegen_flags: <defaults>
</compile_context>

<pallas_src>
import functools

import jax
import jax.numpy as jnp
from jax import lax
from jax.experimental import pallas as pl
from jax.experimental.pallas import tpu as pltpu

LN_EPS = 1e-5


def _mamba_block_kernel(*refs, has_residual: bool, eps: float):
    if has_residual:
        (x_ref, res_in_ref, gamma_ref, beta_ref, w_ref, b_ref,
         out_ref, res_out_ref, h_ref) = refs
    else:
        (x_ref, gamma_ref, beta_ref, w_ref, b_ref,
         out_ref, res_out_ref, h_ref) = refs
        res_in_ref = None

    j = pl.program_id(1)  # output-column tile index (innermost grid axis)

    # Add + LayerNorm once per row tile (j == 0); cache normalized rows in VMEM.
    # Rows of the last (partial) tile beyond the valid range hold stale data; they never
    # contaminate valid rows (all math is row-independent) and their writes are masked.
    @pl.when(j == 0)
    def _():
        x = x_ref[...].astype(jnp.float32)
        if has_residual:
            r = x + res_in_ref[...].astype(jnp.float32)
        else:
            r = x
        res_out_ref[...] = r.astype(res_out_ref.dtype)

        # nn.LayerNorm semantics: biased variance over the feature dim, f32 math.
        mean = jnp.mean(r, axis=-1, keepdims=True)
        c = r - mean
        var = jnp.mean(c * c, axis=-1, keepdims=True)
        inv = lax.rsqrt(var + eps)
        h = c * inv * gamma_ref[...].astype(jnp.float32) + beta_ref[...].astype(jnp.float32)
        # h is cached in matmul_dtype (bf16 by default) purely as MXU input; LN math stays f32.
        h_ref[...] = h.astype(h_ref.dtype)

    # Mixer matmul for this (row tile, column tile): bf16 x bf16 -> f32 accumulate.
    out = jnp.dot(h_ref[...], w_ref[...], preferred_element_type=jnp.float32)
    out_ref[...] = (out + b_ref[...].astype(jnp.float32)).astype(out_ref.dtype)


def _round_up(x, m):
    return -(-x // m) * m


def _pick_col_tile(D, max_tn):
    """Largest MXU-friendly divisor of D that is <= max_tn (prefers 256-aligned, then 128)."""
    if D <= max_tn:
        return D
    for align in (256, 128):   # 256: v6e/v7x MXU occupancy; 128: lane width (v5e MXU)
        if D % align == 0:
            t = (max_tn // align) * align
            while t >= align:
                if D % t == 0:
                    return t
                t -= align
    return D


def _vmem_estimate(tm, tn, D, has_residual, w_bytes, h_bytes, act_bytes):
    est = 2 * tm * D * act_bytes                   # x (double-buffered)
    if has_residual:
        est += 2 * tm * D * act_bytes              # residual in
    est += 2 * tm * D * act_bytes                  # residual out
    est += 2 * tm * tn * act_bytes                 # mixer out
    est += 2 * D * tn * w_bytes                    # weight column tile
    est += 2 * (2 * D + tn) * 4                    # gamma, beta, bias
    est += tm * D * h_bytes                        # LN'd activation scratch
    est += 2 * tm * D * 4                          # allowance for LN-phase temporaries (r, c, h)
    return est


def _vmem_physical_bytes():
    """Physical VMEM per TensorCore; conservative 64 MiB fallback if the query is unavailable."""
    try:
        info = pltpu.get_tpu_info()
        for attr in ("vmem_capacity_bytes", "vmem_size_bytes", "vmem_bytes"):
            v = getattr(info, attr, None)
            if v:
                return int(v)
    except Exception:
        pass
    return 64 * 1024 * 1024


def mamba_block_forward(hidden_states, residual, gamma, beta, w_mixer, b_mixer,
                        *, block_rows=512, block_cols=512,
                        matmul_dtype=jnp.bfloat16,
                        vmem_budget_bytes=None):
    """Pallas implementation of BaseMambaBlock.forward (pre_norm, non-fused path).

    hidden_states: (B, L, D); residual: (B, L, D) or None (first block).
    gamma, beta: (D,) LayerNorm params.  w_mixer: (D, D) (ideally pre-cast to bf16), b_mixer: (D,).
    Returns (mixer_output, residual), each (B, L, D).

    For best performance D should be a multiple of 128 (lane-dense stores; 256 for v6e/v7x MXU).
    """
    B, L, D = hidden_states.shape
    has_residual = residual is not None
    rows = B * L

    w_bytes = jnp.dtype(matmul_dtype).itemsize
    act_bytes = jnp.dtype(hidden_states.dtype).itemsize
    tn = _pick_col_tile(D, block_cols)

    # Generation-aware VMEM budget (~75% of physical: ~96 MiB v5e/v6e, ~48 MiB v7x).
    phys_vmem = _vmem_physical_bytes()
    if vmem_budget_bytes is None:
        vmem_budget_bytes = min(phys_vmem - 16 * 1024 * 1024, int(0.75 * phys_vmem))

    # Row tile: as large as requested, capped so the grid has >= ~8 row tiles when rows allow
    # (megacore / pipeline amortization), then shrunk to fit the VMEM budget.
    tm = max(8, _round_up(min(block_rows, rows), 8))
    tm = min(tm, max(128, _round_up(-(-rows // 8), 8)))
    while (_vmem_estimate(tm, tn, D, has_residual, w_bytes, w_bytes, act_bytes)
           > vmem_budget_bytes and tm > 64):
        tm = max(8, _round_up(tm // 2, 8))
    while (_vmem_estimate(tm, tn, D, has_residual, w_bytes, w_bytes, act_bytes)
           > vmem_budget_bytes and tn > 128 and tn % 2 == 0
           and (tn // 2) % 128 == 0 and D % (tn // 2) == 0):
        tn //= 2

    # No host-side padding: Pallas read-pads / write-masks the partial last row tile.
    x2 = hidden_states.reshape(rows, D)
    gamma2 = gamma.reshape(1, D)
    beta2 = beta.reshape(1, D)
    # Weight should arrive already in matmul_dtype (cast once at parameter setup, not per call).
    w2 = w_mixer if w_mixer.dtype == matmul_dtype else w_mixer.astype(matmul_dtype)
    b2 = b_mixer.reshape(1, D)

    row_tiles = pl.cdiv(rows, tm)
    grid = (row_tiles, D // tn)

    row_spec = pl.BlockSpec((tm, D), lambda i, j: (i, 0))
    gb_spec = pl.BlockSpec((1, D), lambda i, j: (0, 0))
    w_spec = pl.BlockSpec((D, tn), lambda i, j: (0, j))
    b_spec = pl.BlockSpec((1, tn), lambda i, j: (0, j))
    out_spec = pl.BlockSpec((tm, tn), lambda i, j: (i, j))
    res_spec = pl.BlockSpec((tm, D), lambda i, j: (i, 0))

    in_arrays = [x2]
    in_specs = [row_spec]
    aliases = {}
    if has_residual:
        r2 = residual.reshape(rows, D)
        in_arrays.append(r2)
        in_specs.append(row_spec)
        if residual.dtype == hidden_states.dtype:
            aliases[1] = 1                         # residual input -> residual output (no pad copy)
    in_arrays += [gamma2, beta2, w2, b2]
    in_specs += [gb_spec, gb_spec, w_spec, b_spec]

    est = _vmem_estimate(tm, tn, D, has_residual, w_bytes, w_bytes, act_bytes)
    vmem_limit = int(min(phys_vmem,
                         max(32 * 1024 * 1024, int(1.25 * est) + 8 * 1024 * 1024)))

    # bytes_accessed: x read (+ residual read), residual write, out write, and the weight
    # re-streamed once per row tile.
    bytes_accessed = ((3 + (1 if has_residual else 0)) * rows * D * act_bytes
                      + row_tiles * D * D * w_bytes)
    cost = pl.CostEstimate(flops=2 * rows * D * D,
                           transcendentals=0,
                           bytes_accessed=int(bytes_accessed))

    kernel = functools.partial(_mamba_block_kernel,
                               has_residual=has_residual, eps=LN_EPS)

    out, res_out = pl.pallas_call(
        kernel,
        out_shape=(
            jax.ShapeDtypeStruct((rows, D), hidden_states.dtype),
            jax.ShapeDtypeStruct((rows, D), hidden_states.dtype),
        ),
        grid_spec=pltpu.PrefetchScalarGridSpec(
            num_scalar_prefetch=0,
            grid=grid,
            in_specs=in_specs,
            out_specs=[out_spec, res_spec],
            scratch_shapes=[pltpu.VMEM((tm, D), matmul_dtype)],
        ),
        compiler_params=pltpu.CompilerParams(
            dimension_semantics=("parallel", "arbitrary"),
            vmem_limit_bytes=vmem_limit),
        input_output_aliases=aliases,
        cost_estimate=cost,
    )(*in_arrays)

    return out.reshape(B, L, D), res_out.reshape(B, L, D)


def mamba_block_reference(hidden_states, residual, gamma, beta, w_mixer, b_mixer,
                          matmul_dtype=jnp.float32):
    """Pure-JAX reference matching the PyTorch forward (matmul dtype selectable)."""
    residual = hidden_states + residual if residual is not None else hidden_states
    mean = jnp.mean(residual, axis=-1, keepdims=True)
    var = jnp.mean((residual - mean) ** 2, axis=-1, keepdims=True)
    h = (residual - mean) * lax.rsqrt(var + LN_EPS) * gamma + beta
    out = jnp.dot(h.astype(matmul_dtype), w_mixer.astype(matmul_dtype),
                  preferred_element_type=jnp.float32) + b_mixer
    return out, residual


if __name__ == "__main__":
    key = jax.random.PRNGKey(0)
    # rows = B*L = 400 is deliberately NOT a multiple of the row tile -> exercises the
    # pad-free partial-tile path (no host-side jnp.pad / slicing).
    B, L, D = 2, 200, 128
    k1, k2, k3, k4 = jax.random.split(key, 4)

    hidden_states = jax.random.normal(k1, (B, L, D), dtype=jnp.float32)
    residual = jax.random.normal(k2, (B, L, D), dtype=jnp.float32)

    # nn.LayerNorm default init: gamma=1, beta=0; mixer weight/bias from the PRNG.
    gamma = jnp.ones((D,), dtype=jnp.float32)
    beta = jnp.zeros((D,), dtype=jnp.float32)
    w_mixer = jax.random.normal(k3, (D, D), dtype=jnp.float32) * (1.0 / jnp.sqrt(D))
    b_mixer = jax.random.normal(k4, (D,), dtype=jnp.float32) * 0.01

    # One-time parameter cast (NOT per forward call): the kernel consumes the bf16 weight directly.
    w_mixer_bf16 = w_mixer.astype(jnp.bfloat16)

    fwd = jax.jit(mamba_block_forward)
    out, res_out = fwd(hidden_states, residual, gamma, beta, w_mixer_bf16, b_mixer)
    jax.block_until_ready((out, res_out))

    # Matches the kernel's dtype policy (bf16 MXU inputs, f32 accumulate).
    ref_out_bf16, ref_res = mamba_block_reference(
        hidden_states, residual, gamma, beta, w_mixer, b_mixer,
        matmul_dtype=jnp.bfloat16)
    # Full-f32 module semantics (looser tolerance for the bf16 MXU path).
    ref_out_f32, _ = mamba_block_reference(
        hidden_states, residual, gamma, beta, w_mixer, b_mixer,
        matmul_dtype=jnp.float32)

    assert jnp.allclose(res_out, ref_res, atol=1e-5, rtol=1e-5)
    assert jnp.allclose(out, ref_out_bf16, atol=1e-2, rtol=1e-2)
    assert jnp.allclose(out, ref_out_f32, atol=5e-2, rtol=5e-2)

    # First-block path: residual is None (no zero tensor is streamed).
    fwd_first = jax.jit(lambda h, g, b, w, bb:
                        mamba_block_forward(h, None, g, b, w, bb))
    out0, res0 = fwd_first(hidden_states, gamma, beta, w_mixer_bf16, b_mixer)
    jax.block_until_ready((out0, res0))
    ref_out0, ref_res0 = mamba_block_reference(
        hidden_states, None, gamma, beta, w_mixer, b_mixer,
        matmul_dtype=jnp.bfloat16)
    assert jnp.allclose(res0, ref_res0, atol=1e-5, rtol=1e-5)
    assert jnp.allclose(out0, ref_out0, atol=1e-2, rtol=1e-2)

    print("KERNEL_OK")
</pallas_src>

<mosaic_0001>
module attributes {stable_mosaic.version = 11 : i64} {
  func.func @_mamba_block_kernel(%arg0: i32, %arg1: i32, %arg2: memref<128x128xf32, #tpu.memory_space<vmem>>, %arg3: memref<128x128xf32, #tpu.memory_space<vmem>>, %arg4: memref<1x128xf32, #tpu.memory_space<vmem>>, %arg5: memref<1x128xf32, #tpu.memory_space<vmem>>, %arg6: memref<128x128xbf16, #tpu.memory_space<vmem>>, %arg7: memref<1x128xf32, #tpu.memory_space<vmem>>, %arg8: memref<128x128xf32, #tpu.memory_space<vmem>>, %arg9: memref<128x128xf32, #tpu.memory_space<vmem>>, %arg10: memref<128x128xbf16, #tpu.memory_space<vmem>>) attributes {dimension_semantics = [#tpu.dimension_semantics<parallel>, #tpu.dimension_semantics<arbitrary>], iteration_bounds = array<i64: 4, 1>, scalar_prefetch = 0 : i64, scratch_operands = 1 : i64, tpu.core_type = #tpu.core_type<tc>, window_params = [{transform_indices = @transform_0, window_bounds = array<i64: 128, 128>}, {transform_indices = @transform_1, window_bounds = array<i64: 128, 128>}, {pipeline_mode = #tpu.pipeline_mode<synchronous>, transform_indices = @transform_2, window_bounds = array<i64: 1, 128>}, {pipeline_mode = #tpu.pipeline_mode<synchronous>, transform_indices = @transform_3, window_bounds = array<i64: 1, 128>}, {transform_indices = @transform_4, window_bounds = array<i64: 128, 128>}, {transform_indices = @transform_5, window_bounds = array<i64: 1, 128>}, {transform_indices = @transform_6, window_bounds = array<i64: 128, 128>}, {transform_indices = @transform_7, window_bounds = array<i64: 128, 128>}]} {
    %c0_i32 = arith.constant 0 : i32
    %0 = arith.cmpi eq, %arg1, %c0_i32 : i32
    %1 = arith.extui %0 : i1 to i32
    %c0_i32_0 = arith.constant 0 : i32
    %2 = arith.cmpi ne, %1, %c0_i32_0 : i32
    scf.if %2 {
      %c0_8 = arith.constant 0 : index
      %c0_9 = arith.constant 0 : index
      %10 = vector.load %arg2[%c0_8, %c0_9] : memref<128x128xf32, #tpu.memory_space<vmem>>, vector<128x128xf32>
      %c0_10 = arith.constant 0 : index
      %c0_11 = arith.constant 0 : index
      %11 = vector.load %arg3[%c0_10, %c0_11] : memref<128x128xf32, #tpu.memory_space<vmem>>, vector<128x128xf32>
      %12 = arith.addf %10, %11 : vector<128x128xf32>
      %c0_12 = arith.constant 0 : index
      %c0_13 = arith.constant 0 : index
      %13 = vector.load %arg9[%c0_12, %c0_13] : memref<128x128xf32, #tpu.memory_space<vmem>>, vector<128x128xf32>
      tpu.vector_store %arg9[%c0_12, %c0_13], %12 {strides = array<i32>} : memref<128x128xf32, #tpu.memory_space<vmem>>, vector<128x128xf32>,
      %cst_14 = arith.constant dense<0.000000e+00> : vector<128xf32>
      %14 = vector.multi_reduction <add>, %12, %cst_14 [1] : vector<128x128xf32> to vector<128xf32>
      %15 = vector.shape_cast %14 : vector<128xf32> to vector<128x1xf32>
      %cst_15 = arith.constant 1.280000e+02 : f32
      %16 = vector.broadcast %cst_15 : f32 to vector<128x1xf32>
      %17 = arith.divf %15, %16 : vector<128x1xf32>
      %18 = vector.broadcast %17 : vector<128x1xf32> to vector<128x128xf32>
      %19 = arith.subf %12, %18 : vector<128x128xf32>
      %20 = arith.mulf %19, %19 : vector<128x128xf32>
      %cst_16 = arith.constant dense<0.000000e+00> : vector<128xf32>
      %21 = vector.multi_reduction <add>, %20, %cst_16 [1] : vector<128x128xf32> to vector<128xf32>
      %22 = vector.shape_cast %21 : vector<128xf32> to vector<128x1xf32>
      %cst_17 = arith.constant 1.280000e+02 : f32
      %23 = vector.broadcast %cst_17 : f32 to vector<128x1xf32>
      %24 = arith.divf %22, %23 : vector<128x1xf32>
      %cst_18 = arith.constant 9.99999974E-6 : f32
      %25 = vector.broadcast %cst_18 : f32 to vector<128x1xf32>
      %26 = arith.addf %24, %25 : vector<128x1xf32>
      %27 = math.rsqrt %26 : vector<128x1xf32>
      %28 = vector.broadcast %27 : vector<128x1xf32> to vector<128x128xf32>
      %29 = arith.mulf %19, %28 : vector<128x128xf32>
      %c0_19 = arith.constant 0 : index
      %c0_20 = arith.constant 0 : index
      %30 = vector.load %arg4[%c0_19, %c0_20] : memref<1x128xf32, #tpu.memory_space<vmem>>, vector<1x128xf32>
      %31 = vector.broadcast %30 : vector<1x128xf32> to vector<128x128xf32>
      %32 = arith.mulf %29, %31 : vector<128x128xf32>
      %c0_21 = arith.constant 0 : index
      %c0_22 = arith.constant 0 : index
      %33 = vector.load %arg5[%c0_21, %c0_22] : memref<1x128xf32, #tpu.memory_space<vmem>>, vector<1x128xf32>
      %34 = vector.broadcast %33 : vector<1x128xf32> to vector<128x128xf32>
      %35 = arith.addf %32, %34 : vector<128x128xf32>
      %36 = arith.truncf %35 : vector<128x128xf32> to vector<128x128xbf16>
      %c0_23 = arith.constant 0 : index
      %c0_24 = arith.constant 0 : index
      %37 = vector.load %arg10[%c0_23, %c0_24] : memref<128x128xbf16, #tpu.memory_space<vmem>>, vector<128x128xbf16>
      tpu.vector_store %arg10[%c0_23, %c0_24], %36 {strides = array<i32>} : memref<128x128xbf16, #tpu.memory_space<vmem>>, vector<128x128xbf16>,
    } else {
    }
    %c0 = arith.constant 0 : index
    %c0_1 = arith.constant 0 : index
    %3 = vector.load %arg10[%c0, %c0_1] : memref<128x128xbf16, #tpu.memory_space<vmem>>, vector<128x128xbf16>
    %c0_2 = arith.constant 0 : index
    %c0_3 = arith.constant 0 : index
    %4 = vector.load %arg6[%c0_2, %c0_3] : memref<128x128xbf16, #tpu.memory_space<vmem>>, vector<128x128xbf16>
    %cst = arith.constant dense<0.000000e+00> : vector<128x128xf32>
    %5 = tpu.matmul %3, %4, %cst {dimension_numbers = #tpu.dot_dimension_numbers<[1], [0], [0], [1], [0, 0, 1, 1], [], []>} : vector<128x128xbf16>, vector<128x128xbf16>, vector<128x128xf32> -> vector<128x128xf32>
    %c0_4 = arith.constant 0 : index
    %c0_5 = arith.constant 0 : index
    %6 = vector.load %arg7[%c0_4, %c0_5] : memref<1x128xf32, #tpu.memory_space<vmem>>, vector<1x128xf32>
    %7 = vector.broadcast %6 : vector<1x128xf32> to vector<128x128xf32>
    %8 = arith.addf %5, %7 : vector<128x128xf32>
    %c0_6 = arith.constant 0 : index
    %c0_7 = arith.constant 0 : index
    %9 = vector.load %arg8[%c0_6, %c0_7] : memref<128x128xf32, #tpu.memory_space<vmem>>, vector<128x128xf32>
    tpu.vector_store %arg8[%c0_6, %c0_7], %8 {strides = array<i32>} : memref<128x128xf32, #tpu.memory_space<vmem>>, vector<128x128xf32>,
    return
  }
  func.func @transform_0(%arg0: i32, %arg1: i32) -> (i32, i32) {
    %c0_i32 = arith.constant 0 : i32
    %c0_i32_0 = arith.constant 0 : i32
    return %arg0, %c0_i32 : i32, i32
  }
  func.func @transform_1(%arg0: i32, %arg1: i32) -> (i32, i32) {
    %c0_i32 = arith.constant 0 : i32
    %c0_i32_0 = arith.constant 0 : i32
    return %arg0, %c0_i32 : i32, i32
  }
  func.func @transform_2(%arg0: i32, %arg1: i32) -> (i32, i32) {
    %c0_i32 = arith.constant 0 : i32
    %c0_i32_0 = arith.constant 0 : i32
    %c0_i32_1 = arith.constant 0 : i32
    return %c0_i32, %c0_i32_0 : i32, i32
  }
  func.func @transform_3(%arg0: i32, %arg1: i32) -> (i32, i32) {
    %c0_i32 = arith.constant 0 : i32
    %c0_i32_0 = arith.constant 0 : i32
    %c0_i32_1 = arith.constant 0 : i32
    return %c0_i32, %c0_i32_0 : i32, i32
  }
  func.func @transform_4(%arg0: i32, %arg1: i32) -> (i32, i32) {
    %c0_i32 = arith.constant 0 : i32
    %c0_i32_0 = arith.constant 0 : i32
    return %c0_i32, %arg1 : i32, i32
  }
  func.func @transform_5(%arg0: i32, %arg1: i32) -> (i32, i32) {
    %c0_i32 = arith.constant 0 : i32
    %c0_i32_0 = arith.constant 0 : i32
    return %c0_i32, %arg1 : i32, i32
  }
  func.func @transform_6(%arg0: i32, %arg1: i32) -> (i32, i32) {
    %c0_i32 = arith.constant 0 : i32
    return %arg0, %arg1 : i32, i32
  }
  func.func @transform_7(%arg0: i32, %arg1: i32) -> (i32, i32) {
    %c0_i32 = arith.constant 0 : i32
    %c0_i32_0 = arith.constant 0 : i32
    return %arg0, %c0_i32 : i32, i32
  }
}

</mosaic_0001>

<llo_original>
// kernel: mamba_block_forward.1
$region0: #{mamba_block_forward.1}
  #allocation0 [shape = 'u32[]', space=smem, size = 0x4, offset = 0x4, fixed_abs, tag = 'smem constant byte address 0x4 - core index']
  #allocation1 [shape = 'u32[72,128]{1,0:T(1,128)}', space=vmem, size = 0x9000, scoped, tag = 'internal scratch']
  #allocation2 [shape = 'bf16[128,128]{1,0:T(8,128)(2,1)}', space=vmem, size = 0x8000, scoped, tag = 'scratch operand']
  %s0 = inlined_call_operand.vmem [shape: f32[400,128], index: 0, kind: input, shape index: {}]
  %s1 = inlined_call_operand.vmem [shape: f32[400,128], index: 1, kind: input, shape index: {}, may-alias: {1,7}]
  %s2 = inlined_call_operand.vmem [shape: f32[1,128], index: 2, kind: input, shape index: {}]
  %s3 = inlined_call_operand.vmem [shape: f32[1,128], index: 3, kind: input, shape index: {}]
  %s4 = inlined_call_operand.hbm [shape: bf16[128,128], index: 4, kind: input, shape index: {}]
  %s5 = inlined_call_operand.vmem [shape: f32[1,128], index: 5, kind: input, shape index: {}]
  %s6 = inlined_call_operand.hbm [shape: f32[400,128], index: 6, kind: output, shape index: {0}]
  %s7 = inlined_call_operand.vmem [shape: f32[400,128], index: 7, kind: output, shape index: {1}, may-alias: {1,7}]
  %8 = xla_tuple %s6, %s7
  %s9 = sld [smem:[#allocation0]]
  $region121: #{mamba_block_forward.1} parent=0
    _
  %s11 = ssub.s32 1, %s9
  %s12 = scalar_select 0, %s11, %s9
  $region1: #{mamba_block_forward.1} parent=0
    #allocation3 [shape = 'u8[32768]{0}', space=vmem, size = 0x8000, scoped, tag = 'input window, operand 4, single buffered']
    #allocation4 [shape = 's32[2]{0}', space=sflag, size = 0x8, scoped, tag = 'scoped memory for mamba_block_forward.1']
    #allocation5 [shape = 's32[2]{0}', space=sflag, size = 0x8, scoped, tag = 'scoped memory for mamba_block_forward.1']
    #allocation6 [shape = 'u8[131072]{0}', space=vmem, size = 0x20000, scoped, tag = 'output window, operand 0']
    #allocation7 [shape = 'u8[131072]{0}', space=vmem, size = 0x20000, scoped, tag = 'output window, operand 1']
    %13 = vsyncpa [#allocation4], 0
    %14 = vsyncpa [#allocation5], 0
    %s15 = scalar_lea.sflag [#allocation5], 1
    %16 = vsyncpa %s15, 0
    loop: start=0, step=1, limit=6
    $region2: #{mamba_block_forward.1} parent=1 // loop_pre_header
      _
    $region3: #{mamba_block_forward.1} parent=1 // loop_header
      %s18 = sphi 0, %s22
      %p19 = scmp.ge.s32.totalorder %s18, 6
      %s25 = sphi 0, %s37
      %s26 = sphi 0, %s33
      %s27 = sphi 0, %s25
      %s28 = sphi 0, %s26
      %s29 = sphi 0, %s27
      %s30 = sphi 0, %s28
      %s40 = sphi 0, %s42
      %s43 = sphi 0, %s40
      %s44 = sphi 0, %s43
      %s60 = sphi 0, %s44
      %s66 = sphi 0, %s68
      %s69 = sphi 0, %s66
      %s70 = sphi 0, %s69
      %s86 = sphi 0, %s70
      %s90 = sphi 0, %s90
      %s92 = sphi 0, %s90
      %s93 = sphi 0, %s92
      %s107 = sphi 0, %s93
      %s111 = sphi 0, %s111
      %s113 = sphi 0, %s111
      %s114 = sphi 0, %s113
      %s128 = sphi 0, %s114
      %s134 = sphi 0, %s136
      %s137 = sphi 0, %s134
      %s138 = sphi 0, %s137
      %s154 = sphi 0, %s138
      %s160 = sphi 0, %s162
      %s163 = sphi 0, %s160
      %s164 = sphi 0, %s163
      %s180 = sphi 0, %s164
      %s188 = sphi 0, %s190
      %s191 = sphi 0, %s188
      %s192 = sphi 0, %s191
      %s208 = sphi 0, %s192
      %s214 = sphi 0, %s216
      %s217 = sphi 0, %s214
      %s218 = sphi 0, %s217
      %s234 = sphi 0, %s218
    $region4: #{mamba_block_forward.1} parent=1 // loop_header_branch
      %21 = sbr.rel (%p19) target = $region8
    $region5: #{mamba_block_forward.1} parent=1 // loop_body
      %s23 = ssub.s32 %s18, 1
      %s24 = ssub.s32 %s18, 2
      %s31 = sadd.s32 1, %s26
      %p32 = scmp.ge.s32.totalorder %s31, 1
      %s33 = scalar_select %p32, 0, %s31
      %s34 = sadd.s32 1, %s25
      %s35 = scalar_select %p32, %s34, %s25
      %p36 = scmp.ge.s32.totalorder %s35, 4
      %s37 = scalar_select %p36, 0, %s35
      %s38 = ssub.s32 %s25, %s37
      %p39 = scmp.eq.s32.totalorder %s38, 0
      %s41 = sadd.s32 %s40, 1
      %s42 = scalar_select %p39, %s40, %s41
      %p45 = pneg %p39
      %p46 = scmp.eq.s32.totalorder %s18, 3
      %p47 = por %p45, %p46
      %p48 = scmp.ne.s32.totalorder %s40, %s43
      %p49 = scmp.eq.s32.totalorder %s18, 0
      %p50 = por %p48, %p49
      %p51 = scmp.ne.s32.totalorder %s40, %s43
      %p52 = scmp.eq.s32.totalorder %s23, 3
      %p53 = por %p51, %p52
      %p54 = scmp.ne.s32.totalorder %s43, %s44
      %p55 = scmp.eq.s32.totalorder %s23, 0
      %p56 = por %p54, %p55
      %p57 = scmp.ne.s32.totalorder %s43, %s44
      %p58 = scmp.eq.s32.totalorder %s24, 3
      %p59 = por %p57, %p58
      %p61 = scmp.ne.s32.totalorder %s44, %s60
      %p62 = scmp.eq.s32.totalorder %s24, 0
      %p63 = por %p61, %p62
      %s64 = ssub.s32 %s25, %s37
      %p65 = scmp.eq.s32.totalorder %s64, 0
      %s67 = sadd.s32 %s66, 1
      %s68 = scalar_select %p65, %s66, %s67
      %p71 = pneg %p65
      %p72 = scmp.eq.s32.totalorder %s18, 3
      %p73 = por %p71, %p72
      %p74 = scmp.ne.s32.totalorder %s66, %s69
      %p75 = scmp.eq.s32.totalorder %s18, 0
      %p76 = por %p74, %p75
      %p77 = scmp.ne.s32.totalorder %s66, %s69
      %p78 = scmp.eq.s32.totalorder %s23, 3
      %p79 = por %p77, %p78
      %p80 = scmp.ne.s32.totalorder %s69, %s70
      %p81 = scmp.eq.s32.totalorder %s23, 0
      %p82 = por %p80, %p81
      %p83 = scmp.ne.s32.totalorder %s69, %s70
      %p84 = scmp.eq.s32.totalorder %s24, 3
      %p85 = por %p83, %p84
      %p87 = scmp.ne.s32.totalorder %s70, %s86
      %p88 = scmp.eq.s32.totalorder %s24, 0
      %p89 = por %p87, %p88
      %s91 = sadd.s32 %s90, 1
      %p94 = scmp.eq.s32.totalorder %s18, 3
      %p95 = scmp.ne.s32.totalorder %s90, %s92
      %p96 = scmp.eq.s32.totalorder %s18, 0
      %p97 = por %p95, %p96
      %p98 = scmp.ne.s32.totalorder %s90, %s92
      %p99 = scmp.eq.s32.totalorder %s23, 3
      %p100 = por %p98, %p99
      %p101 = scmp.ne.s32.totalorder %s92, %s93
      %p102 = scmp.eq.s32.totalorder %s23, 0
      %p103 = por %p101, %p102
      %p104 = scmp.ne.s32.totalorder %s92, %s93
      %p105 = scmp.eq.s32.totalorder %s24, 3
      %p106 = por %p104, %p105
      %p108 = scmp.ne.s32.totalorder %s93, %s107
      %p109 = scmp.eq.s32.totalorder %s24, 0
      %p110 = por %p108, %p109
      %s112 = sadd.s32 %s111, 1
      %p115 = scmp.eq.s32.totalorder %s18, 3
      %p116 = scmp.ne.s32.totalorder %s111, %s113
      %p117 = scmp.eq.s32.totalorder %s18, 0
      %p118 = por %p116, %p117
      %p119 = scmp.ne.s32.totalorder %s111, %s113
      %p120 = scmp.eq.s32.totalorder %s23, 3
      %p121 = por %p119, %p120
      %p122 = scmp.ne.s32.totalorder %s113, %s114
      %p123 = scmp.eq.s32.totalorder %s23, 0
      %p124 = por %p122, %p123
      %p125 = scmp.ne.s32.totalorder %s113, %s114
      %p126 = scmp.eq.s32.totalorder %s24, 3
      %p127 = por %p125, %p126
      %p129 = scmp.ne.s32.totalorder %s114, %s128
      %p130 = scmp.eq.s32.totalorder %s24, 0
      %p131 = por %p129, %p130
      %s132 = ssub.s32 %s26, %s33
      %p133 = scmp.eq.s32.totalorder %s132, 0
      %s135 = sadd.s32 %s134, 1
      %s136 = scalar_select %p133, %s134, %s135
      %p139 = pneg %p133
      %p140 = scmp.eq.s32.totalorder %s18, 3
      %p141 = por %p139, %p140
      %p142 = scmp.ne.s32.totalorder %s134, %s137
      %p143 = scmp.eq.s32.totalorder %s18, 0
      %p144 = por %p142, %p143
      %p145 = scmp.ne.s32.totalorder %s134, %s137
      %p146 = scmp.eq.s32.totalorder %s23, 3
      %p147 = por %p145, %p146
      %p148 = scmp.ne.s32.totalorder %s137, %s138
      %p149 = scmp.eq.s32.totalorder %s23, 0
      %p150 = por %p148, %p149
      %p151 = scmp.ne.s32.totalorder %s137, %s138
      %p152 = scmp.eq.s32.totalorder %s24, 3
      %p153 = por %p151, %p152
      %p155 = scmp.ne.s32.totalorder %s138, %s154
      %p156 = scmp.eq.s32.totalorder %s24, 0
      %p157 = por %p155, %p156
      %s158 = ssub.s32 %s26, %s33
      %p159 = scmp.eq.s32.totalorder %s158, 0
      %s161 = sadd.s32 %s160, 1
      %s162 = scalar_select %p159, %s160, %s161
      %p165 = pneg %p159
      %p166 = scmp.eq.s32.totalorder %s18, 3
      %p167 = por %p165, %p166
      %p168 = scmp.ne.s32.totalorder %s160, %s163
      %p169 = scmp.eq.s32.totalorder %s18, 0
      %p170 = por %p168, %p169
      %p171 = scmp.ne.s32.totalorder %s160, %s163
      %p172 = scmp.eq.s32.totalorder %s23, 3
      %p173 = por %p171, %p172
      %p174 = scmp.ne.s32.totalorder %s163, %s164
      %p175 = scmp.eq.s32.totalorder %s23, 0
      %p176 = por %p174, %p175
      %p177 = scmp.ne.s32.totalorder %s163, %s164
      %p178 = scmp.eq.s32.totalorder %s24, 3
      %p179 = por %p177, %p178
      %p181 = scmp.ne.s32.totalorder %s164, %s180
      %p182 = scmp.eq.s32.totalorder %s24, 0
      %p183 = por %p181, %p182
      %s184 = ssub.s32 %s25, %s37
      %s185 = ssub.s32 %s26, %s33
      %s186 = sor.u32 %s184, %s185
      %p187 = scmp.eq.s32.totalorder %s186, 0
      %s189 = sadd.s32 %s188, 1
      %s190 = scalar_select %p187, %s188, %s189
      %p193 = pneg %p187
      %p194 = scmp.eq.s32.totalorder %s18, 3
      %p195 = por %p193, %p194
      %p196 = scmp.ne.s32.totalorder %s188, %s191
      %p197 = scmp.eq.s32.totalorder %s18, 0
      %p198 = por %p196, %p197
      %p199 = scmp.ne.s32.totalorder %s188, %s191
      %p200 = scmp.eq.s32.totalorder %s23, 3
      %p201 = por %p199, %p200
      %p202 = scmp.ne.s32.totalorder %s191, %s192
      %p203 = scmp.eq.s32.totalorder %s23, 0
      %p204 = por %p202, %p203
      %p205 = scmp.ne.s32.totalorder %s191, %s192
      %p206 = scmp.eq.s32.totalorder %s24, 3
      %p207 = por %p205, %p206
      %p209 = scmp.ne.s32.totalorder %s192, %s208
      %p210 = scmp.eq.s32.totalorder %s24, 0
      %p211 = por %p209, %p210
      %s212 = ssub.s32 %s25, %s37
      %p213 = scmp.eq.s32.totalorder %s212, 0
      %s215 = sadd.s32 %s214, 1
      %s216 = scalar_select %p213, %s214, %s215
      %p219 = pneg %p213
      %p220 = scmp.eq.s32.totalorder %s18, 3
      %p221 = por %p219, %p220
      %p222 = scmp.ne.s32.totalorder %s214, %s217
      %p223 = scmp.eq.s32.totalorder %s18, 0
      %p224 = por %p222, %p223
      %p225 = scmp.ne.s32.totalorder %s214, %s217
      %p226 = scmp.eq.s32.totalorder %s23, 3
      %p227 = por %p225, %p226
      %p228 = scmp.ne.s32.totalorder %s217, %s218
      %p229 = scmp.eq.s32.totalorder %s23, 0
      %p230 = por %p228, %p229
      %p231 = scmp.ne.s32.totalorder %s217, %s218
      %p232 = scmp.eq.s32.totalorder %s24, 3
      %p233 = por %p231, %p232
      %p235 = scmp.ne.s32.totalorder %s218, %s234
      %p236 = scmp.eq.s32.totalorder %s24, 0
      %p237 = por %p235, %p236
      %p238 = scmp.le.s32.totalorder 1, %s18
      %p239 = scmp.lt.s32.totalorder %s18, 5
      %p240 = pnand %p238, %p239
      %p241 = pneg %p240
      // Predicated region
      $region9: #{mamba_block_forward.1} parent=5 // pred_check
        _
      $region10: #{mamba_block_forward.1} parent=5 // pred_check_branch
        %243 = sbr.rel (%p240) target = $region12
      $region11: #{mamba_block_forward.1} parent=5 // pred_region
        %s244 = ssub.s32 %s18, 1
        // Predicated region
        $region13: #{mamba_block_forward.1} parent=11 // pred_check
          %p245 = pneg %p103
        $region14: #{mamba_block_forward.1} parent=11 // pred_check_branch
          %247 = sbr.rel (%p245) target = $region16
        $region15: #{mamba_block_forward.1} parent=11 // pred_region
          _
        $region16: #{mamba_block_forward.1} parent=11 // pred_fallthru
          _
        // Predicated region
        $region17: #{mamba_block_forward.1} parent=11 // pred_check
          %p248 = pneg %p124
        $region18: #{mamba_block_forward.1} parent=11 // pred_check_branch
          %250 = sbr.rel (%p248) target = $region20
        $region19: #{mamba_block_forward.1} parent=11 // pred_region
          _
        $region20: #{mamba_block_forward.1} parent=11 // pred_fallthru
          _
        // Predicated region
        $region21: #{mamba_block_forward.1} parent=11 // pred_check
          %p251 = pneg %p150
        $region22: #{mamba_block_forward.1} parent=11 // pred_check_branch
          %253 = sbr.rel (%p251) target = $region24
        $region23: #{mamba_block_forward.1} parent=11 // pred_region
          %255 = vsyncadd [#allocation4], 0
          %s256 = smul.addr %s28, 4
          %s257 = scalar_lea.hbm %s4, %s256
          %s258 = sshll.u32 %s257, 4
          %s259 = int_to_ptr.hbm [resolvable:$true] %s258
          %s260 = sshll.u32 [#allocation3], 4
          %s261 = int_to_ptr.vmem [resolvable:$true] %s260
          %266 = dma.hbm_to_vmem [thread:$0]  %s259, 1024, %s261, [#allocation4], 64, 64, 4
        $region24: #{mamba_block_forward.1} parent=11 // pred_fallthru
          _
        // Predicated region
        $region25: #{mamba_block_forward.1} parent=11 // pred_check
          %p267 = pneg %p176
        $region26: #{mamba_block_forward.1} parent=11 // pred_check_branch
          %269 = sbr.rel (%p267) target = $region28
        $region27: #{mamba_block_forward.1} parent=11 // pred_region
          %p270 = scmp.lt.s32.totalorder %s28, 0
          %s271 = scalar_select %p270, %s28, 0
          %s272 = scalar_lea.vmem %s5, %s271
        $region28: #{mamba_block_forward.1} parent=11 // pred_fallthru
          _
      $region12: #{mamba_block_forward.1} parent=5 // pred_fallthru
        _
      %p273 = scmp.lt.s32.totalorder %s18, 4
      // Predicated region
      $region29: #{mamba_block_forward.1} parent=5 // pred_check
        %p274 = pneg %p273
      $region30: #{mamba_block_forward.1} parent=5 // pred_check_branch
        %276 = sbr.rel (%p274) target = $region32
      $region31: #{mamba_block_forward.1} parent=5 // pred_region
        // Predicated region
        $region33: #{mamba_block_forward.1} parent=31 // pred_check
          %p277 = pneg %p50
        $region34: #{mamba_block_forward.1} parent=31 // pred_check_branch
          %279 = sbr.rel (%p277) target = $region36
        $region35: #{mamba_block_forward.1} parent=31 // pred_region
          %s280 = smul.u32 16, %s25
          %s281 = ssub.s32 50, %s280
          %p282 = scmp.lt.s32.totalorder %s281, 16
          %s283 = scalar_select %p282, %s281, 16
          %s284 = smul.u32 8, %s283
          %p285 = scmp.lt.s32.totalorder %s280, 49
          %s286 = scalar_select %p285, %s280, 49
          %s287 = smul.addr %s286, 8
          %s288 = scalar_lea.vmem %s0, %s287
          %s289 = smul.u32 16, %s25
          %s290 = ssub.s32 50, %s289
          %p291 = scmp.lt.s32.totalorder %s290, 16
          %s292 = scalar_select %p291, %s290, 16
          %s293 = smul.u32 8, %s292
        $region36: #{mamba_block_forward.1} parent=31 // pred_fallthru
          _
        // Predicated region
        $region37: #{mamba_block_forward.1} parent=31 // pred_check
          %p294 = pneg %p76
        $region38: #{mamba_block_forward.1} parent=31 // pred_check_branch
          %296 = sbr.rel (%p294) target = $region40
        $region39: #{mamba_block_forward.1} parent=31 // pred_region
          %s297 = smul.u32 16, %s25
          %s298 = ssub.s32 50, %s297
          %p299 = scmp.lt.s32.totalorder %s298, 16
          %s300 = scalar_select %p299, %s298, 16
          %s301 = smul.u32 8, %s300
          %p302 = scmp.lt.s32.totalorder %s297, 49
          %s303 = scalar_select %p302, %s297, 49
          %s304 = smul.addr %s303, 8
          %s305 = scalar_lea.vmem %s1, %s304
          %s306 = smul.u32 16, %s25
          %s307 = ssub.s32 50, %s306
          %p308 = scmp.lt.s32.totalorder %s307, 16
          %s309 = scalar_select %p308, %s307, 16
          %s310 = smul.u32 8, %s309
        $region40: #{mamba_block_forward.1} parent=31 // pred_fallthru
          _
      $region32: #{mamba_block_forward.1} parent=5 // pred_fallthru
        _
      %p311 = scmp.le.s32.totalorder 1, %s18
      %p312 = scmp.lt.s32.totalorder %s18, 5
      %p313 = pnand %p311, %p312
      %p314 = pneg %p313
      // Predicated region
      $region41: #{mamba_block_forward.1} parent=5 // pred_check
        _
      $region42: #{mamba_block_forward.1} parent=5 // pred_check_branch
        %316 = sbr.rel (%p313) target = $region44
      $region43: #{mamba_block_forward.1} parent=5 // pred_region
        %s317 = ssub.s32 %s18, 1
        // Predicated region
        $region45: #{mamba_block_forward.1} parent=43 // pred_check
          %p318 = pneg %p150
        $region46: #{mamba_block_forward.1} parent=43 // pred_check_branch
          %320 = sbr.rel (%p318) target = $region48
        $region47: #{mamba_block_forward.1} parent=43 // pred_region
          %322 = dma.done [#allocation4], 1024
        $region48: #{mamba_block_forward.1} parent=43 // pred_fallthru
          _
        %s323 = smul.u32 16, %s27
        %s324 = ssub.s32 50, %s323
        %p325 = scmp.lt.s32.totalorder %s324, 16
        %s326 = scalar_select %p325, %s324, 16
        %s327 = smul.u32 8, %s326
        %p328 = scmp.lt.s32.totalorder %s323, 49
        %s329 = scalar_select %p328, %s323, 49
        %s330 = smul.addr %s329, 8
        %s331 = scalar_lea.vmem %s0, %s330
        %p332 = pneg %p56
        %p333 = pneg %p53
        %s334 = smul.u32 16, %s27
        %s335 = ssub.s32 50, %s334
        %p336 = scmp.lt.s32.totalorder %s335, 16
        %s337 = scalar_select %p336, %s335, 16
        %s338 = smul.u32 8, %s337
        %p339 = scmp.lt.s32.totalorder %s334, 49
        %s340 = scalar_select %p339, %s334, 49
        %s341 = smul.addr %s340, 8
        %s342 = scalar_lea.vmem %s1, %s341
        %p343 = pneg %p82
        %p344 = pneg %p79
        %p345 = pneg %p103
        %p346 = pneg %p100
        %p347 = pneg %p124
        %p348 = pneg %p121
        %p349 = pneg %p150
        %p350 = pneg %p147
        %p351 = scmp.lt.s32.totalorder %s28, 0
        %s352 = scalar_select %p351, %s28, 0
        %s353 = scalar_lea.vmem %s5, %s352
        %p354 = pneg %p176
        %p355 = pneg %p173
        %p356 = pneg %p204
        %p357 = pneg %p201
        %s358 = sand.u32 %s191, 1
        %s359 = scalar_lea.sflag [#allocation5], %s358
        %s360 = sand.u32 %s191, 1
        %s361 = smul.addr %s360, 128
        %s362 = scalar_lea.vmem [#allocation6], %s361
        %p363 = pneg %p230
        %p364 = pneg %p227
        %s365 = sand.u32 %s217, 1
        %s366 = sand.u32 %s217, 1
        %s367 = smul.addr %s366, 128
        %s368 = scalar_lea.vmem [#allocation7], %s367
        %s369 = smul.u32 16, %s27
        %s370 = ssub.s32 50, %s369
        %p371 = scmp.lt.s32.totalorder %s370, 16
        %s372 = scalar_select %p371, %s370, 16
        %s373 = smul.u32 8, %s372
        %p374 = scmp.lt.s32.totalorder %s369, 49
        %s375 = scalar_select %p374, %s369, 49
        %s376 = smul.addr %s375, 8
        %s377 = scalar_lea.vmem %s0, %s376
        %s378 = smul.u32 16, %s27
        %s379 = ssub.s32 50, %s378
        %p380 = scmp.lt.s32.totalorder %s379, 16
        %s381 = scalar_select %p380, %s379, 16
        %s382 = smul.u32 8, %s381
        %s383 = smul.u32 16, %s27
        %s384 = ssub.s32 50, %s383
        %p385 = scmp.lt.s32.totalorder %s384, 16
        %s386 = scalar_select %p385, %s384, 16
        %s387 = smul.u32 8, %s386
        %p388 = scmp.lt.s32.totalorder %s383, 49
        %s389 = scalar_select %p388, %s383, 49
        %s390 = smul.addr %s389, 8
        %s391 = scalar_lea.vmem %s1, %s390
        %s392 = smul.u32 16, %s27
        %s393 = ssub.s32 50, %s392
        %p394 = scmp.lt.s32.totalorder %s393, 16
        %s395 = scalar_select %p394, %s393, 16
        %s396 = smul.u32 8, %s395
        %p397 = scmp.lt.s32.totalorder %s28, 0
        %s398 = scalar_select %p397, %s28, 0
        %s399 = scalar_lea.vmem %s5, %s398
        %s400 = smul.u32 16, %s27
        %s401 = ssub.s32 50, %s400
        %p402 = scmp.lt.s32.totalorder %s401, 16
        %s403 = scalar_select %p402, %s401, 16
        %s404 = smul.u32 8, %s403
        %s405 = smul.u32 16, %s27
        %s406 = ssub.s32 50, %s405
        %p407 = scmp.lt.s32.totalorder %s406, 16
        %s408 = scalar_select %p407, %s406, 16
        %s409 = smul.u32 8, %s408
        %p410 = scmp.eq.s32.totalorder %s28, 0
        // Predicated region
        $region49: #{mamba_block_forward.1} parent=43 // pred_check
          %p411 = pneg %p410
        $region50: #{mamba_block_forward.1} parent=43 // pred_check_branch
          %413 = sbr.rel (%p411) target = $region52
        $region51: #{mamba_block_forward.1} parent=43 // pred_region
          %v414 = vld [vmem:[%s377] sm:$0xff]
          %v415 = vld [vmem:[%s377 + $0x8] sm:$0xff]
          %v416 = vld [vmem:[%s377 + $0x10] sm:$0xff]
          %v417 = vld [vmem:[%s377 + $0x18] sm:$0xff]
          %v418 = vld [vmem:[%s377 + $0x20] sm:$0xff]
          %v419 = vld [vmem:[%s377 + $0x28] sm:$0xff]
          %v420 = vld [vmem:[%s377 + $0x30] sm:$0xff]
          %v421 = vld [vmem:[%s377 + $0x38] sm:$0xff]
          %v422 = vld [vmem:[%s377 + $0x40] sm:$0xff]
          %v423 = vld [vmem:[%s377 + $0x48] sm:$0xff]
          %v424 = vld [vmem:[%s377 + $0x50] sm:$0xff]
          %v425 = vld [vmem:[%s377 + $0x58] sm:$0xff]
          %v426 = vld [vmem:[%s377 + $0x60] sm:$0xff]
          %v427 = vld [vmem:[%s377 + $0x68] sm:$0xff]
          %v428 = vld [vmem:[%s377 + $0x70] sm:$0xff]
          %v429 = vld [vmem:[%s377 + $0x78] sm:$0xff]
          %v430 = vld [vmem:[%s391] sm:$0xff]
          %v431 = vld [vmem:[%s391 + $0x8] sm:$0xff]
          %v432 = vld [vmem:[%s391 + $0x10] sm:$0xff]
          %v433 = vld [vmem:[%s391 + $0x18] sm:$0xff]
          %v434 = vld [vmem:[%s391 + $0x20] sm:$0xff]
          %v435 = vld [vmem:[%s391 + $0x28] sm:$0xff]
          %v436 = vld [vmem:[%s391 + $0x30] sm:$0xff]
          %v437 = vld [vmem:[%s391 + $0x38] sm:$0xff]
          %v438 = vld [vmem:[%s391 + $0x40] sm:$0xff]
          %v439 = vld [vmem:[%s391 + $0x48] sm:$0xff]
          %v440 = vld [vmem:[%s391 + $0x50] sm:$0xff]
          %v441 = vld [vmem:[%s391 + $0x58] sm:$0xff]
          %v442 = vld [vmem:[%s391 + $0x60] sm:$0xff]
          %v443 = vld [vmem:[%s391 + $0x68] sm:$0xff]
          %v444 = vld [vmem:[%s391 + $0x70] sm:$0xff]
          %v445 = vld [vmem:[%s391 + $0x78] sm:$0xff]
          %v446 = vadd.f32 %v414, %v430
          %v447 = vadd.f32 %v415, %v431
          %v448 = vadd.f32 %v416, %v432
          %v449 = vadd.f32 %v417, %v433
          %v450 = vadd.f32 %v418, %v434
          %v451 = vadd.f32 %v419, %v435
          %v452 = vadd.f32 %v420, %v436
          %v453 = vadd.f32 %v421, %v437
          %v454 = vadd.f32 %v422, %v438
          %v455 = vadd.f32 %v423, %v439
          %v456 = vadd.f32 %v424, %v440
          %v457 = vadd.f32 %v425, %v441
          %v458 = vadd.f32 %v426, %v442
          %v459 = vadd.f32 %v427, %v443
          %v460 = vadd.f32 %v428, %v444
          %v461 = vadd.f32 %v429, %v445
          %462 = vst [vmem:[%s368] sm:$0xff] %v446
          %463 = vst [vmem:[%s368 + $0x8] sm:$0xff] %v447
          %464 = vst [vmem:[%s368 + $0x10] sm:$0xff] %v448
          %465 = vst [vmem:[%s368 + $0x18] sm:$0xff] %v449
          %466 = vst [vmem:[%s368 + $0x20] sm:$0xff] %v450
          %467 = vst [vmem:[%s368 + $0x28] sm:$0xff] %v451
          %468 = vst [vmem:[%s368 + $0x30] sm:$0xff] %v452
          %469 = vst [vmem:[%s368 + $0x38] sm:$0xff] %v453
          %470 = vst [vmem:[%s368 + $0x40] sm:$0xff] %v454
          %471 = vst [vmem:[%s368 + $0x48] sm:$0xff] %v455
          %472 = vst [vmem:[%s368 + $0x50] sm:$0xff] %v456
          %473 = vst [vmem:[%s368 + $0x58] sm:$0xff] %v457
          %474 = vst [vmem:[%s368 + $0x60] sm:$0xff] %v458
          %475 = vst [vmem:[%s368 + $0x68] sm:$0xff] %v459
          %476 = vst [vmem:[%s368 + $0x70] sm:$0xff] %v460
          %477 = vst [vmem:[%s368 + $0x78] sm:$0xff] %v461
          %478 = vadd.xlane.f32.xlu0 %v446
          %v479 = vpop.xlane.xlu0 %478
          %480 = vadd.xlane.f32.xlu0 %v447
          %v481 = vpop.xlane.xlu0 %480
          %482 = vadd.xlane.f32.xlu0 %v448
          %v483 = vpop.xlane.xlu0 %482
          %484 = vadd.xlane.f32.xlu0 %v449
          %v485 = vpop.xlane.xlu0 %484
          %486 = vadd.xlane.f32.xlu0 %v450
          %v487 = vpop.xlane.xlu0 %486
          %488 = vadd.xlane.f32.xlu0 %v451
          %v489 = vpop.xlane.xlu0 %488
          %490 = vadd.xlane.f32.xlu0 %v452
          %v491 = vpop.xlane.xlu0 %490
          %492 = vadd.xlane.f32.xlu0 %v453
          %v493 = vpop.xlane.xlu0 %492
          %494 = vadd.xlane.f32.xlu0 %v454
          %v495 = vpop.xlane.xlu0 %494
          %496 = vadd.xlane.f32.xlu0 %v455
          %v497 = vpop.xlane.xlu0 %496
          %498 = vadd.xlane.f32.xlu0 %v456
          %v499 = vpop.xlane.xlu0 %498
          %500 = vadd.xlane.f32.xlu0 %v457
          %v501 = vpop.xlane.xlu0 %500
          %502 = vadd.xlane.f32.xlu0 %v458
          %v503 = vpop.xlane.xlu0 %502
          %504 = vadd.xlane.f32.xlu0 %v459
          %v505 = vpop.xlane.xlu0 %504
          %506 = vadd.xlane.f32.xlu0 %v460
          %v507 = vpop.xlane.xlu0 %506
          %508 = vadd.xlane.f32.xlu0 %v461
          %v509 = vpop.xlane.xlu0 %508
          %v510 = vrcp.pop 128.0
          %v511 = vmul.f32 128.0, %v510
          %v512 = vsub.f32 1.0, %v511
          %v513 = vmul.f32 %v510, %v512
          %v514 = vadd.f32 %v510, %v513
          %vm515 = vweird.f32 %v510
          %v516 = vsel %vm515, %v510, %v514
          %v517 = vmul.f32 %v479, %v516
          %v518 = vmul.f32 %v481, %v516
          %v519 = vmul.f32 %v483, %v516
          %v520 = vmul.f32 %v485, %v516
          %v521 = vmul.f32 %v487, %v516
          %v522 = vmul.f32 %v489, %v516
          %v523 = vmul.f32 %v491, %v516
          %v524 = vmul.f32 %v493, %v516
          %v525 = vmul.f32 %v495, %v516
          %v526 = vmul.f32 %v497, %v516
          %v527 = vmul.f32 %v499, %v516
          %v528 = vmul.f32 %v501, %v516
          %v529 = vmul.f32 %v503, %v516
          %v530 = vmul.f32 %v505, %v516
          %v531 = vmul.f32 %v507, %v516
          %v532 = vmul.f32 %v509, %v516
          %v533 = vsub.f32 %v446, %v517
          %v534 = vsub.f32 %v447, %v518
          %v535 = vsub.f32 %v448, %v519
          %v536 = vsub.f32 %v449, %v520
          %v537 = vsub.f32 %v450, %v521
          %v538 = vsub.f32 %v451, %v522
          %v539 = vsub.f32 %v452, %v523
          %v540 = vsub.f32 %v453, %v524
          %v541 = vsub.f32 %v454, %v525
          %v542 = vsub.f32 %v455, %v526
          %v543 = vsub.f32 %v456, %v527
          %v544 = vsub.f32 %v457, %v528
          %v545 = vsub.f32 %v458, %v529
          %v546 = vsub.f32 %v459, %v530
          %v547 = vsub.f32 %v460, %v531
          %v548 = vsub.f32 %v461, %v532
          %v549 = vmul.f32 %v533, %v533
          %v550 = vmul.f32 %v534, %v534
          %v551 = vmul.f32 %v535, %v535
          %v552 = vmul.f32 %v536, %v536
          %v553 = vmul.f32 %v537, %v537
          %v554 = vmul.f32 %v538, %v538
          %v555 = vmul.f32 %v539, %v539
          %v556 = vmul.f32 %v540, %v540
          %v557 = vmul.f32 %v541, %v541
          %v558 = vmul.f32 %v542, %v542
          %v559 = vmul.f32 %v543, %v543
          %v560 = vmul.f32 %v544, %v544
          %v561 = vmul.f32 %v545, %v545
          %v562 = vmul.f32 %v546, %v546
          %v563 = vmul.f32 %v547, %v547
          %v564 = vmul.f32 %v548, %v548
          %565 = vadd.xlane.f32.xlu0 %v549
          %v566 = vpop.xlane.xlu0 %565
          %567 = vadd.xlane.f32.xlu0 %v550
          %v568 = vpop.xlane.xlu0 %567
          %569 = vadd.xlane.f32.xlu0 %v551
          %v570 = vpop.xlane.xlu0 %569
          %571 = vadd.xlane.f32.xlu0 %v552
          %v572 = vpop.xlane.xlu0 %571
          %573 = vadd.xlane.f32.xlu0 %v553
          %v574 = vpop.xlane.xlu0 %573
          %575 = vadd.xlane.f32.xlu0 %v554
          %v576 = vpop.xlane.xlu0 %575
          %577 = vadd.xlane.f32.xlu0 %v555
          %v578 = vpop.xlane.xlu0 %577
          %579 = vadd.xlane.f32.xlu0 %v556
          %v580 = vpop.xlane.xlu0 %579
          %581 = vadd.xlane.f32.xlu0 %v557
          %v582 = vpop.xlane.xlu0 %581
          %583 = vadd.xlane.f32.xlu0 %v558
          %v584 = vpop.xlane.xlu0 %583
          %585 = vadd.xlane.f32.xlu0 %v559
          %v586 = vpop.xlane.xlu0 %585
          %587 = vadd.xlane.f32.xlu0 %v560
          %v588 = vpop.xlane.xlu0 %587
          %589 = vadd.xlane.f32.xlu0 %v561
          %v590 = vpop.xlane.xlu0 %589
          %591 = vadd.xlane.f32.xlu0 %v562
          %v592 = vpop.xlane.xlu0 %591
          %593 = vadd.xlane.f32.xlu0 %v563
          %v594 = vpop.xlane.xlu0 %593
          %595 = vadd.xlane.f32.xlu0 %v564
          %v596 = vpop.xlane.xlu0 %595
          %v597 = vmul.f32 %v566, %v516
          %v598 = vmul.f32 %v568, %v516
          %v599 = vmul.f32 %v570, %v516
          %v600 = vmul.f32 %v572, %v516
          %v601 = vmul.f32 %v574, %v516
          %v602 = vmul.f32 %v576, %v516
          %v603 = vmul.f32 %v578, %v516
          %v604 = vmul.f32 %v580, %v516
          %v605 = vmul.f32 %v582, %v516
          %v606 = vmul.f32 %v584, %v516
          %v607 = vmul.f32 %v586, %v516
          %v608 = vmul.f32 %v588, %v516
          %v609 = vmul.f32 %v590, %v516
          %v610 = vmul.f32 %v592, %v516
          %v611 = vmul.f32 %v594, %v516
          %v612 = vmul.f32 %v596, %v516
          %v613 = vadd.f32 %v597, 1e-05
          %v614 = vadd.f32 %v598, 1e-05
          %v615 = vadd.f32 %v599, 1e-05
          %v616 = vadd.f32 %v600, 1e-05
          %v617 = vadd.f32 %v601, 1e-05
          %v618 = vadd.f32 %v602, 1e-05
          %v619 = vadd.f32 %v603, 1e-05
          %v620 = vadd.f32 %v604, 1e-05
          %v621 = vadd.f32 %v605, 1e-05
          %v622 = vadd.f32 %v606, 1e-05
          %v623 = vadd.f32 %v607, 1e-05
          %v624 = vadd.f32 %v608, 1e-05
          %v625 = vadd.f32 %v609, 1e-05
          %v626 = vadd.f32 %v610, 1e-05
          %v627 = vadd.f32 %v611, 1e-05
          %v628 = vadd.f32 %v612, 1e-05
          %v629 = vrsqrt.pop %v613
          %v630 = vmul.f32 %v629, %v613
          %v631 = vmul.f32 %v630, %v629
          %v632 = vmul.f32 0.5, %v631
          %v633 = vsub.f32 1.5, %v632
          %v634 = vmul.f32 %v629, %v633
          %vm635 = vweird.f32 %v613
          %vm636 = vweird.f32 %v629
          %vm637 = vmor %vm635, %vm636
          %v638 = vsel %vm637, %v629, %v634
          %v639 = vrsqrt.pop %v614
          %v640 = vmul.f32 %v639, %v614
          %v641 = vmul.f32 %v640, %v639
          %v642 = vmul.f32 0.5, %v641
          %v643 = vsub.f32 1.5, %v642
          %v644 = vmul.f32 %v639, %v643
          %vm645 = vweird.f32 %v614
          %vm646 = vweird.f32 %v639
          %vm647 = vmor %vm645, %vm646
          %v648 = vsel %vm647, %v639, %v644
          %v649 = vrsqrt.pop %v615
          %v650 = vmul.f32 %v649, %v615
          %v651 = vmul.f32 %v650, %v649
          %v652 = vmul.f32 0.5, %v651
          %v653 = vsub.f32 1.5, %v652
          %v654 = vmul.f32 %v649, %v653
          %vm655 = vweird.f32 %v615
          %vm656 = vweird.f32 %v649
          %vm657 = vmor %vm655, %vm656
          %v658 = vsel %vm657, %v649, %v654
          %v659 = vrsqrt.pop %v616
          %v660 = vmul.f32 %v659, %v616
          %v661 = vmul.f32 %v660, %v659
          %v662 = vmul.f32 0.5, %v661
          %v663 = vsub.f32 1.5, %v662
          %v664 = vmul.f32 %v659, %v663
          %vm665 = vweird.f32 %v616
          %vm666 = vweird.f32 %v659
          %vm667 = vmor %vm665, %vm666
          %v668 = vsel %vm667, %v659, %v664
          %v669 = vrsqrt.pop %v617
          %v670 = vmul.f32 %v669, %v617
          %v671 = vmul.f32 %v670, %v669
          %v672 = vmul.f32 0.5, %v671
          %v673 = vsub.f32 1.5, %v672
          %v674 = vmul.f32 %v669, %v673
          %vm675 = vweird.f32 %v617
          %vm676 = vweird.f32 %v669
          %vm677 = vmor %vm675, %vm676
          %v678 = vsel %vm677, %v669, %v674
          %v679 = vrsqrt.pop %v618
          %v680 = vmul.f32 %v679, %v618
          %v681 = vmul.f32 %v680, %v679
          %v682 = vmul.f32 0.5, %v681
          %v683 = vsub.f32 1.5, %v682
          %v684 = vmul.f32 %v679, %v683
          %vm685 = vweird.f32 %v618
          %vm686 = vweird.f32 %v679
          %vm687 = vmor %vm685, %vm686
          %v688 = vsel %vm687, %v679, %v684
          %v689 = vrsqrt.pop %v619
          %v690 = vmul.f32 %v689, %v619
          %v691 = vmul.f32 %v690, %v689
          %v692 = vmul.f32 0.5, %v691
          %v693 = vsub.f32 1.5, %v692
          %v694 = vmul.f32 %v689, %v693
          %vm695 = vweird.f32 %v619
          %vm696 = vweird.f32 %v689
          %vm697 = vmor %vm695, %vm696
          %v698 = vsel %vm697, %v689, %v694
          %v699 = vrsqrt.pop %v620
          %v700 = vmul.f32 %v699, %v620
          %v701 = vmul.f32 %v700, %v699
          %v702 = vmul.f32 0.5, %v701
          %v703 = vsub.f32 1.5, %v702
          %v704 = vmul.f32 %v699, %v703
          %vm705 = vweird.f32 %v620
          %vm706 = vweird.f32 %v699
          %vm707 = vmor %vm705, %vm706
          %v708 = vsel %vm707, %v699, %v704
          %v709 = vrsqrt.pop %v621
          %v710 = vmul.f32 %v709, %v621
          %v711 = vmul.f32 %v710, %v709
          %v712 = vmul.f32 0.5, %v711
          %v713 = vsub.f32 1.5, %v712
          %v714 = vmul.f32 %v709, %v713
          %vm715 = vweird.f32 %v621
          %vm716 = vweird.f32 %v709
          %vm717 = vmor %vm715, %vm716
          %v718 = vsel %vm717, %v709, %v714
          %v719 = vrsqrt.pop %v622
          %v720 = vmul.f32 %v719, %v622
          %v721 = vmul.f32 %v720, %v719
          %v722 = vmul.f32 0.5, %v721
          %v723 = vsub.f32 1.5, %v722
          %v724 = vmul.f32 %v719, %v723
          %vm725 = vweird.f32 %v622
          %vm726 = vweird.f32 %v719
          %vm727 = vmor %vm725, %vm726
          %v728 = vsel %vm727, %v719, %v724
          %v729 = vrsqrt.pop %v623
          %v730 = vmul.f32 %v729, %v623
          %v731 = vmul.f32 %v730, %v729
          %v732 = vmul.f32 0.5, %v731
          %v733 = vsub.f32 1.5, %v732
          %v734 = vmul.f32 %v729, %v733
          %vm735 = vweird.f32 %v623
          %vm736 = vweird.f32 %v729
          %vm737 = vmor %vm735, %vm736
          %v738 = vsel %vm737, %v729, %v734
          %v739 = vrsqrt.pop %v624
          %v740 = vmul.f32 %v739, %v624
          %v741 = vmul.f32 %v740, %v739
          %v742 = vmul.f32 0.5, %v741
          %v743 = vsub.f32 1.5, %v742
          %v744 = vmul.f32 %v739, %v743
          %vm745 = vweird.f32 %v624
          %vm746 = vweird.f32 %v739
          %vm747 = vmor %vm745, %vm746
          %v748 = vsel %vm747, %v739, %v744
          %v749 = vrsqrt.pop %v625
          %v750 = vmul.f32 %v749, %v625
          %v751 = vmul.f32 %v750, %v749
          %v752 = vmul.f32 0.5, %v751
          %v753 = vsub.f32 1.5, %v752
          %v754 = vmul.f32 %v749, %v753
          %vm755 = vweird.f32 %v625
          %vm756 = vweird.f32 %v749
          %vm757 = vmor %vm755, %vm756
          %v758 = vsel %vm757, %v749, %v754
          %v759 = vrsqrt.pop %v626
          %v760 = vmul.f32 %v759, %v626
          %v761 = vmul.f32 %v760, %v759
          %v762 = vmul.f32 0.5, %v761
          %v763 = vsub.f32 1.5, %v762
          %v764 = vmul.f32 %v759, %v763
          %vm765 = vweird.f32 %v626
          %vm766 = vweird.f32 %v759
          %vm767 = vmor %vm765, %vm766
          %v768 = vsel %vm767, %v759, %v764
          %v769 = vrsqrt.pop %v627
          %v770 = vmul.f32 %v769, %v627
          %v771 = vmul.f32 %v770, %v769
          %v772 = vmul.f32 0.5, %v771
          %v773 = vsub.f32 1.5, %v772
          %v774 = vmul.f32 %v769, %v773
          %vm775 = vweird.f32 %v627
          %vm776 = vweird.f32 %v769
          %vm777 = vmor %vm775, %vm776
          %v778 = vsel %vm777, %v769, %v774
          %v779 = vrsqrt.pop %v628
          %v780 = vmul.f32 %v779, %v628
          %v781 = vmul.f32 %v780, %v779
          %v782 = vmul.f32 0.5, %v781
          %v783 = vsub.f32 1.5, %v782
          %v784 = vmul.f32 %v779, %v783
          %vm785 = vweird.f32 %v628
          %vm786 = vweird.f32 %v779
          %vm787 = vmor %vm785, %vm786
          %v788 = vsel %vm787, %v779, %v784
          %v789 = vmul.f32 %v533, %v638
          %v790 = vmul.f32 %v534, %v648
          %v791 = vmul.f32 %v535, %v658
          %v792 = vmul.f32 %v536, %v668
          %v793 = vmul.f32 %v537, %v678
          %v794 = vmul.f32 %v538, %v688
          %v795 = vmul.f32 %v539, %v698
          %v796 = vmul.f32 %v540, %v708
          %v797 = vmul.f32 %v541, %v718
          %v798 = vmul.f32 %v542, %v728
          %v799 = vmul.f32 %v543, %v738
          %v800 = vmul.f32 %v544, %v748
          %v801 = vmul.f32 %v545, %v758
          %v802 = vmul.f32 %v546, %v768
          %v803 = vmul.f32 %v547, %v778
          %v804 = vmul.f32 %v548, %v788
          %v805 = vld [vmem:[%s2] sm:$0x1]
          %v807 = vperm.slane %v805, 0
          %v809 = vmul.f32 %v789, %v807
          %v810 = vmul.f32 %v790, %v807
          %v811 = vmul.f32 %v791, %v807
          %v812 = vmul.f32 %v792, %v807
          %v813 = vmul.f32 %v793, %v807
          %v814 = vmul.f32 %v794, %v807
          %v815 = vmul.f32 %v795, %v807
          %v816 = vmul.f32 %v796, %v807
          %v817 = vmul.f32 %v797, %v807
          %v818 = vmul.f32 %v798, %v807
          %v819 = vmul.f32 %v799, %v807
          %v820 = vmul.f32 %v800, %v807
          %v821 = vmul.f32 %v801, %v807
          %v822 = vmul.f32 %v802, %v807
          %v823 = vmul.f32 %v803, %v807
          %v824 = vmul.f32 %v804, %v807
          %v825 = vld [vmem:[%s3] sm:$0x1]
          %v827 = vperm.slane %v825, 0
          %v829 = vadd.f32 %v809, %v827
          %v830 = vadd.f32 %v810, %v827
          %v831 = vadd.f32 %v811, %v827
          %v832 = vadd.f32 %v812, %v827
          %v833 = vadd.f32 %v813, %v827
          %v834 = vadd.f32 %v814, %v827
          %v835 = vadd.f32 %v815, %v827
          %v836 = vadd.f32 %v816, %v827
          %v837 = vadd.f32 %v817, %v827
          %v838 = vadd.f32 %v818, %v827
          %v839 = vadd.f32 %v819, %v827
          %v840 = vadd.f32 %v820, %v827
          %v841 = vadd.f32 %v821, %v827
          %v842 = vadd.f32 %v822, %v827
          %v843 = vadd.f32 %v823, %v827
          %v844 = vadd.f32 %v824, %v827
          %v845 = vpack.c.bf16 %v829, %v829
          %v846 = vpack.c.bf16 %v830, %v830
          %v847 = vpack.c.bf16 %v831, %v831
          %v848 = vpack.c.bf16 %v832, %v832
          %v849 = vpack.c.bf16 %v833, %v833
          %v850 = vpack.c.bf16 %v834, %v834
          %v851 = vpack.c.bf16 %v835, %v835
          %v852 = vpack.c.bf16 %v836, %v836
          %v853 = vpack.c.bf16 %v837, %v837
          %v854 = vpack.c.bf16 %v838, %v838
          %v855 = vpack.c.bf16 %v839, %v839
          %v856 = vpack.c.bf16 %v840, %v840
          %v857 = vpack.c.bf16 %v841, %v841
          %v858 = vpack.c.bf16 %v842, %v842
          %v859 = vpack.c.bf16 %v843, %v843
          %v860 = vpack.c.bf16 %v844, %v844
          %861 = vst [vmem:[#allocation2] sm:$0xf] %v845
          %862 = vst [vmem:[#allocation2 + $0x4] sm:$0xf] %v846
          %863 = vst [vmem:[#allocation2 + $0x8] sm:$0xf] %v847
          %864 = vst [vmem:[#allocation2 + $0xc] sm:$0xf] %v848
          %865 = vst [vmem:[#allocation2 + $0x10] sm:$0xf] %v849
          %866 = vst [vmem:[#allocation2 + $0x14] sm:$0xf] %v850
          %867 = vst [vmem:[#allocation2 + $0x18] sm:$0xf] %v851
          %868 = vst [vmem:[#allocation2 + $0x1c] sm:$0xf] %v852
          %869 = vst [vmem:[#allocation2 + $0x20] sm:$0xf] %v853
          %870 = vst [vmem:[#allocation2 + $0x24] sm:$0xf] %v854
          %871 = vst [vmem:[#allocation2 + $0x28] sm:$0xf] %v855
          %872 = vst [vmem:[#allocation2 + $0x2c] sm:$0xf] %v856
          %873 = vst [vmem:[#allocation2 + $0x30] sm:$0xf] %v857
          %874 = vst [vmem:[#allocation2 + $0x34] sm:$0xf] %v858
          %875 = vst [vmem:[#allocation2 + $0x38] sm:$0xf] %v859
          %876 = vst [vmem:[#allocation2 + $0x3c] sm:$0xf] %v860
        $region52: #{mamba_block_forward.1} parent=43 // pred_fallthru
          _
        %v877 = vld [vmem:[#allocation2] sm:$0xf]
        %v878 = vld [vmem:[#allocation2 + $0x4] sm:$0xf]
        %v879 = vld [vmem:[#allocation2 + $0x8] sm:$0xf]
        %v880 = vld [vmem:[#allocation2 + $0xc] sm:$0xf]
        %v881 = vld [vmem:[#allocation2 + $0x10] sm:$0xf]
        %v882 = vld [vmem:[#allocation2 + $0x14] sm:$0xf]
        %v883 = vld [vmem:[#allocation2 + $0x18] sm:$0xf]
        %v884 = vld [vmem:[#allocation2 + $0x1c] sm:$0xf]
        %v885 = vld [vmem:[#allocation2 + $0x20] sm:$0xf]
        %v886 = vld [vmem:[#allocation2 + $0x24] sm:$0xf]
        %v887 = vld [vmem:[#allocation2 + $0x28] sm:$0xf]
        %v888 = vld [vmem:[#allocation2 + $0x2c] sm:$0xf]
        %v889 = vld [vmem:[#allocation2 + $0x30] sm:$0xf]
        %v890 = vld [vmem:[#allocation2 + $0x34] sm:$0xf]
        %v891 = vld [vmem:[#allocation2 + $0x38] sm:$0xf]
        %v892 = vld [vmem:[#allocation2 + $0x3c] sm:$0xf]
        %v893 = vld [vmem:[#allocation3] sm:$0xf]
        %v894 = vld [vmem:[#allocation3 + $0x4] sm:$0xf]
        %v895 = vld [vmem:[#allocation3 + $0x8] sm:$0xf]
        %v896 = vld [vmem:[#allocation3 + $0xc] sm:$0xf]
        %v897 = vld [vmem:[#allocation3 + $0x10] sm:$0xf]
        %v898 = vld [vmem:[#allocation3 + $0x14] sm:$0xf]
        %v899 = vld [vmem:[#allocation3 + $0x18] sm:$0xf]
        %v900 = vld [vmem:[#allocation3 + $0x1c] sm:$0xf]
        %v901 = vld [vmem:[#allocation3 + $0x20] sm:$0xf]
        %v902 = vld [vmem:[#allocation3 + $0x24] sm:$0xf]
        %v903 = vld [vmem:[#allocation3 + $0x28] sm:$0xf]
        %v904 = vld [vmem:[#allocation3 + $0x2c] sm:$0xf]
        %v905 = vld [vmem:[#allocation3 + $0x30] sm:$0xf]
        %v906 = vld [vmem:[#allocation3 + $0x34] sm:$0xf]
        %v907 = vld [vmem:[#allocation3 + $0x38] sm:$0xf]
        %v908 = vld [vmem:[#allocation3 + $0x3c] sm:$0xf]
        %v909 = vld [vmem:[%s399] sm:$0x1]
        %v911 = vperm.slane %v909, 0
        %v929 = vunpack.c.l.b16 %v877
        %v930 = vunpack.c.l.b16 %v878
        %v931 = vunpack.c.l.b16 %v879
        %v932 = vunpack.c.l.b16 %v880
        %v933 = vunpack.c.l.b16 %v881
        %v934 = vunpack.c.l.b16 %v882
        %v935 = vunpack.c.l.b16 %v883
        %v936 = vunpack.c.l.b16 %v884
        %v937 = vunpack.c.l.b16 %v885
        %v938 = vunpack.c.l.b16 %v886
        %v939 = vunpack.c.l.b16 %v887
        %v940 = vunpack.c.l.b16 %v888
        %v941 = vunpack.c.l.b16 %v889
        %v942 = vunpack.c.l.b16 %v890
        %v943 = vunpack.c.l.b16 %v891
        %v944 = vunpack.c.l.b16 %v892
        %v945 = vpack.c.b16 %v930, %v929
        %v946 = vpack.c.b16 %v932, %v931
        %v947 = vpack.c.b16 %v934, %v933
        %v948 = vpack.c.b16 %v936, %v935
        %v949 = vpack.c.b16 %v938, %v937
        %v950 = vpack.c.b16 %v940, %v939
        %v951 = vpack.c.b16 %v942, %v941
        %v952 = vpack.c.b16 %v944, %v943
        %v977 = vunpack.c.l.b16 %v893
        %v978 = vunpack.c.l.b16 %v894
        %v979 = vunpack.c.l.b16 %v895
        %v980 = vunpack.c.l.b16 %v896
        %v981 = vunpack.c.l.b16 %v897
        %v982 = vunpack.c.l.b16 %v898
        %v983 = vunpack.c.l.b16 %v899
        %v984 = vunpack.c.l.b16 %v900
        %v985 = vunpack.c.l.b16 %v901
        %v986 = vunpack.c.l.b16 %v902
        %v987 = vunpack.c.l.b16 %v903
        %v988 = vunpack.c.l.b16 %v904
        %v989 = vunpack.c.l.b16 %v905
        %v990 = vunpack.c.l.b16 %v906
        %v991 = vunpack.c.l.b16 %v907
        %v992 = vunpack.c.l.b16 %v908
        %v993 = vpack.c.b16 %v978, %v977
        %v994 = vpack.c.b16 %v980, %v979
        %v995 = vpack.c.b16 %v982, %v981
        %v996 = vpack.c.b16 %v984, %v983
        %v997 = vpack.c.b16 %v986, %v985
        %v998 = vpack.c.b16 %v988, %v987
        %v999 = vpack.c.b16 %v990, %v989
        %v1000 = vpack.c.b16 %v992, %v991
        %1009 = vmatpush.bf16.msra.mxu0 %v1000
        %1010 = vmatpush.bf16.msra.mxu0 %v999
        %1011 = vmatpush.bf16.msra.mxu0 %v998
        %1012 = vmatpush.bf16.msra.mxu0 %v997
        %1013 = vmatpush.bf16.msra.mxu0 %v996
        %1014 = vmatpush.bf16.msra.mxu0 %v995
        %1015 = vmatpush.bf16.msra.mxu0 %v994
        %1016 = vmatpush.bf16.msra.mxu0 %v993
        %1017 = vmatmul.bf16.gmra.mxu0 %v945
        %v1018 = vpop.f32.mrf.mxu0
        %v1019 = vadd.f32 %v911, %v1018
        %v1020 = vpop.f32.mrf.mxu0
        %v1021 = vadd.f32 %v911, %v1020
        %1022 = vmatmul.bf16.gmra.mxu0 %v946
        %v1023 = vpop.f32.mrf.mxu0
        %v1024 = vadd.f32 %v911, %v1023
        %v1025 = vpop.f32.mrf.mxu0
        %v1026 = vadd.f32 %v911, %v1025
        %1027 = vmatmul.bf16.gmra.mxu0 %v947
        %v1028 = vpop.f32.mrf.mxu0
        %v1029 = vadd.f32 %v911, %v1028
        %v1030 = vpop.f32.mrf.mxu0
        %v1031 = vadd.f32 %v911, %v1030
        %1032 = vmatmul.bf16.gmra.mxu0 %v948
        %v1033 = vpop.f32.mrf.mxu0
        %v1034 = vadd.f32 %v911, %v1033
        %v1035 = vpop.f32.mrf.mxu0
        %v1036 = vadd.f32 %v911, %v1035
        %1037 = vmatmul.bf16.gmra.mxu0 %v949
        %v1038 = vpop.f32.mrf.mxu0
        %v1039 = vadd.f32 %v911, %v1038
        %v1040 = vpop.f32.mrf.mxu0
        %v1041 = vadd.f32 %v911, %v1040
        %1042 = vmatmul.bf16.gmra.mxu0 %v950
        %v1043 = vpop.f32.mrf.mxu0
        %v1044 = vadd.f32 %v911, %v1043
        %v1045 = vpop.f32.mrf.mxu0
        %v1046 = vadd.f32 %v911, %v1045
        %1047 = vmatmul.bf16.gmra.mxu0 %v951
        %v1048 = vpop.f32.mrf.mxu0
        %v1049 = vadd.f32 %v911, %v1048
        %v1050 = vpop.f32.mrf.mxu0
        %v1051 = vadd.f32 %v911, %v1050
        %1052 = vmatmul.bf16.gmra.mxu0 %v952
        %v1053 = vpop.f32.mrf.mxu0
        %v1054 = vadd.f32 %v911, %v1053
        %v1055 = vpop.f32.mrf.mxu0
        %v1056 = vadd.f32 %v911, %v1055
        %1057 = vdwg.mxu0
        %1058 = vst [vmem:[%s362] sm:$0xff] %v1019
        %1059 = vst [vmem:[%s362 + $0x8] sm:$0xff] %v1021
        %1060 = vst [vmem:[%s362 + $0x10] sm:$0xff] %v1024
        %1061 = vst [vmem:[%s362 + $0x18] sm:$0xff] %v1026
        %1062 = vst [vmem:[%s362 + $0x20] sm:$0xff] %v1029
        %1063 = vst [vmem:[%s362 + $0x28] sm:$0xff] %v1031
        %1064 = vst [vmem:[%s362 + $0x30] sm:$0xff] %v1034
        %1065 = vst [vmem:[%s362 + $0x38] sm:$0xff] %v1036
        %1066 = vst [vmem:[%s362 + $0x40] sm:$0xff] %v1039
        %1067 = vst [vmem:[%s362 + $0x48] sm:$0xff] %v1041
        %1068 = vst [vmem:[%s362 + $0x50] sm:$0xff] %v1044
        %1069 = vst [vmem:[%s362 + $0x58] sm:$0xff] %v1046
        %1070 = vst [vmem:[%s362 + $0x60] sm:$0xff] %v1049
        %1071 = vst [vmem:[%s362 + $0x68] sm:$0xff] %v1051
        %1072 = vst [vmem:[%s362 + $0x70] sm:$0xff] %v1054
        %1073 = vst [vmem:[%s362 + $0x78] sm:$0xff] %v1056
        %s1074 = sand.u32 %s191, 1
        %s1075 = scalar_lea.sflag [#allocation5], %s1074
        %s1076 = sand.u32 %s191, 1
        %s1077 = smul.addr %s1076, 128
        %s1078 = scalar_lea.vmem [#allocation6], %s1077
        %s1079 = sand.u32 %s217, 1
        %s1080 = sand.u32 %s217, 1
        %s1081 = smul.addr %s1080, 128
        %s1082 = scalar_lea.vmem [#allocation7], %s1081
        // Predicated region
        $region53: #{mamba_block_forward.1} parent=43 // pred_check
          %p1083 = pneg %p201
        $region54: #{mamba_block_forward.1} parent=43 // pred_check_branch
          %1085 = sbr.rel (%p1083) target = $region56
        $region55: #{mamba_block_forward.1} parent=43 // pred_region
          %s1086 = smul.u32 16, %s27
          %s1087 = ssub.s32 50, %s1086
          %p1088 = scmp.lt.s32.totalorder %s1087, 16
          %s1089 = scalar_select %p1088, %s1087, 16
          %s1090 = smul.u32 8, %s1089
          %s1091 = ssub.s32 128, %s1090
          %s1092 = sshll.u32 %s1091, 4
          %1093 = vsyncadd %s1075, %s1092
          %p1094 = scmp.ne.s32.totalorder 0, %s1090
          %s1095 = sadd.s32 %s28, %s1086
          %s1096 = smul.addr %s1095, 8
          %s1097 = scalar_lea.hbm %s6, %s1096
          %s1098 = smul.u32 8, %s1089
          %s1099 = sshll.u32 %s1078, 4
          %s1100 = int_to_ptr.vmem [resolvable:$true] %s1099
          %s1101 = sshll.u32 %s1097, 4
          %s1102 = int_to_ptr.hbm [resolvable:$true] %s1101
          %s1103 = sshll.u32 %s1098, 4
          %1107 = dma.vmem_to_hbm [thread:$0]  (%p1094), %s1100, %s1103, %s1102, %s1075, 128, 128, 8
        $region56: #{mamba_block_forward.1} parent=43 // pred_fallthru
          _
        // Predicated region
        $region57: #{mamba_block_forward.1} parent=43 // pred_check
          %p1108 = pneg %p227
        $region58: #{mamba_block_forward.1} parent=43 // pred_check_branch
          %1110 = sbr.rel (%p1108) target = $region60
        $region59: #{mamba_block_forward.1} parent=43 // pred_region
          %s1111 = smul.u32 16, %s27
          %s1112 = ssub.s32 50, %s1111
          %p1113 = scmp.lt.s32.totalorder %s1112, 16
          %s1114 = scalar_select %p1113, %s1112, 16
          %s1115 = smul.u32 8, %s1114
          %p1116 = scmp.ne.s32.totalorder 0, %s1115
          %s1117 = smul.addr %s1111, 8
          %s1118 = scalar_lea.vmem %s7, %s1117
          // Predicated region
          $region61: #{mamba_block_forward.1} parent=59 // pred_check
            %p1119 = pneg %p1116
          $region62: #{mamba_block_forward.1} parent=59 // pred_check_branch
            %1121 = sbr.rel (%p1119) target = $region64
          $region63: #{mamba_block_forward.1} parent=59 // pred_region
            // Predicated region
            $region65: #{mamba_block_forward.1} parent=63 // pred_check
              _
            $region66: #{mamba_block_forward.1} parent=63 // pred_check_branch
              %1123 = sbr.rel (0) target = $region68
            $region67: #{mamba_block_forward.1} parent=63 // pred_region
              // Predicated region
              $region87: #{mamba_block_forward.1} parent=67 // pred_check
                _
              $region88: #{mamba_block_forward.1} parent=67 // pred_check_branch
                %1203 = sbr.rel (0) target = $region90
              $region89: #{mamba_block_forward.1} parent=67 // pred_region
                %s1204 = sshrl.u32 %s1114, 4
                // While loop
                $region91: #{mamba_block_forward.1} parent=89 // loop_pre_header
                  _
                $region92: #{mamba_block_forward.1} parent=89 // loop_header
                  %s1206 = sphi 0, %s1208
                  %p1207 = scmp.ge.s32.totalorder %s1206, %s1204
                  %s1211 = sphi 0, %s1248
                  %s1212 = sphi %s1082, %s1251
                  %s1213 = sphi %s1118, %s1252
                $region93: #{mamba_block_forward.1} parent=89 // loop_header_branch
                  %1210 = sbr.rel (%p1207) target = $region97
                $region94: #{mamba_block_forward.1} parent=89 // loop_body
                  %v1214 = vld [vmem:[%s1212] sm:$0xff]
                  %1215 = vst [vmem:[%s1213] sm:$0xff] %v1214
                  %v1216 = vld [vmem:[%s1212 + $0x8] sm:$0xff]
                  %1217 = vst [vmem:[%s1213 + $0x8] sm:$0xff] %v1216
                  %v1218 = vld [vmem:[%s1212 + $0x10] sm:$0xff]
                  %1219 = vst [vmem:[%s1213 + $0x10] sm:$0xff] %v1218
                  %v1220 = vld [vmem:[%s1212 + $0x18] sm:$0xff]
                  %1221 = vst [vmem:[%s1213 + $0x18] sm:$0xff] %v1220
                  %v1222 = vld [vmem:[%s1212 + $0x20] sm:$0xff]
                  %1223 = vst [vmem:[%s1213 + $0x20] sm:$0xff] %v1222
                  %v1224 = vld [vmem:[%s1212 + $0x28] sm:$0xff]
                  %1225 = vst [vmem:[%s1213 + $0x28] sm:$0xff] %v1224
                  %v1226 = vld [vmem:[%s1212 + $0x30] sm:$0xff]
                  %1227 = vst [vmem:[%s1213 + $0x30] sm:$0xff] %v1226
                  %v1228 = vld [vmem:[%s1212 + $0x38] sm:$0xff]
                  %1229 = vst [vmem:[%s1213 + $0x38] sm:$0xff] %v1228
                  %v1230 = vld [vmem:[%s1212 + $0x40] sm:$0xff]
                  %1231 = vst [vmem:[%s1213 + $0x40] sm:$0xff] %v1230
                  %v1232 = vld [vmem:[%s1212 + $0x48] sm:$0xff]
                  %1233 = vst [vmem:[%s1213 + $0x48] sm:$0xff] %v1232
                  %v1234 = vld [vmem:[%s1212 + $0x50] sm:$0xff]
                  %1235 = vst [vmem:[%s1213 + $0x50] sm:$0xff] %v1234
                  %v1236 = vld [vmem:[%s1212 + $0x58] sm:$0xff]
                  %1237 = vst [vmem:[%s1213 + $0x58] sm:$0xff] %v1236
                  %v1238 = vld [vmem:[%s1212 + $0x60] sm:$0xff]
                  %1239 = vst [vmem:[%s1213 + $0x60] sm:$0xff] %v1238
                  %v1240 = vld [vmem:[%s1212 + $0x68] sm:$0xff]
                  %1241 = vst [vmem:[%s1213 + $0x68] sm:$0xff] %v1240
                  %v1242 = vld [vmem:[%s1212 + $0x70] sm:$0xff]
                  %1243 = vst [vmem:[%s1213 + $0x70] sm:$0xff] %v1242
                  %v1244 = vld [vmem:[%s1212 + $0x78] sm:$0xff]
                  %1245 = vst [vmem:[%s1213 + $0x78] sm:$0xff] %v1244
                  %s1246 = sadd.s32 1, %s1211
                  %p1247 = scmp.ge.s32.totalorder %s1246, %s1204
                  %s1248 = scalar_select %p1247, 0, %s1246
                  %s1249 = smul.u32 %s1248, 128
                  %s1250 = smul.u32 %s1248, 128
                  %s1251 = scalar_lea.vmem %s1082, %s1249 [#allocation7]
                  %s1252 = scalar_lea.vmem %s1118, %s1250
                $region95: #{mamba_block_forward.1} parent=89 // loop_footer
                  %s1208 = sadd.s32 %s1206, 1
                $region96: #{mamba_block_forward.1} parent=89 // loop_footer_branch
                  %1205 = sbr.rel target = $region92
                $region97: #{mamba_block_forward.1} parent=89 // loop_exit
                  _
                %s1253 = sshrl.u32 %s1114, 4
                %s1254 = sand.u32 %s1114, 15
                %s1255 = smul.u32 %s1253, 16
                %s1256 = smul.u32 8, %s1255
                %s1257 = scalar_lea.vmem %s1082, %s1256 [#allocation7]
                %s1258 = smul.u32 8, %s1255
                %s1259 = scalar_lea.vmem %s1118, %s1258
                // While loop
                $region98: #{mamba_block_forward.1} parent=89 // loop_pre_header
                  _
                $region99: #{mamba_block_forward.1} parent=89 // loop_header
                  %s1261 = sphi 0, %s1263
                  %p1262 = scmp.ge.s32.totalorder %s1261, %s1254
                  %s1266 = sphi 0, %s1273
                  %s1267 = sphi %s1257, %s1276
                  %s1268 = sphi %s1259, %s1277
                $region100: #{mamba_block_forward.1} parent=89 // loop_header_branch
                  %1265 = sbr.rel (%p1262) target = $region104
                $region101: #{mamba_block_forward.1} parent=89 // loop_body
                  %v1269 = vld [vmem:[%s1267] sm:$0xff]
                  %1270 = vst [vmem:[%s1268] sm:$0xff] %v1269
                  %s1271 = sadd.s32 1, %s1266
                  %p1272 = scmp.ge.s32.totalorder %s1271, %s1254
                  %s1273 = scalar_select %p1272, 0, %s1271
                  %s1274 = smul.u32 %s1273, 8
                  %s1275 = smul.u32 %s1273, 8
                  %s1276 = scalar_lea.vmem %s1257, %s1274 [#allocation7]
                  %s1277 = scalar_lea.vmem %s1259, %s1275
                $region102: #{mamba_block_forward.1} parent=89 // loop_footer
                  %s1263 = sadd.s32 %s1261, 1
                $region103: #{mamba_block_forward.1} parent=89 // loop_footer_branch
                  %1260 = sbr.rel target = $region99
                $region104: #{mamba_block_forward.1} parent=89 // loop_exit
                  _
              $region90: #{mamba_block_forward.1} parent=67 // pred_fallthru
                _
              // Predicated region
              $region105: #{mamba_block_forward.1} parent=67 // pred_check
                _
              $region106: #{mamba_block_forward.1} parent=67 // pred_check_branch
                %1279 = sbr.rel target = $region108
              $region107: #{mamba_block_forward.1} parent=67 // pred_region
                _
              $region108: #{mamba_block_forward.1} parent=67 // pred_fallthru
                _
            $region68: #{mamba_block_forward.1} parent=63 // pred_fallthru
              _
            // Predicated region
            $region69: #{mamba_block_forward.1} parent=63 // pred_check
              _
            $region70: #{mamba_block_forward.1} parent=63 // pred_check_branch
              %1125 = sbr.rel target = $region72
            $region71: #{mamba_block_forward.1} parent=63 // pred_region
              %s1127 = ssub.s32 256, 1
              %s1128 = sshrl.u32 %s1114, 4
              // While loop
              $region73: #{mamba_block_forward.1} parent=71 // loop_pre_header
                _
              $region74: #{mamba_block_forward.1} parent=71 // loop_header
                %s1130 = sphi 0, %s1132
                %p1131 = scmp.ge.s32.totalorder %s1130, %s1128
                %s1135 = sphi 0, %s1172
                %s1136 = sphi %s1082, %s1175
                %s1137 = sphi %s1118, %s1176
              $region75: #{mamba_block_forward.1} parent=71 // loop_header_branch
                %1134 = sbr.rel (%p1131) target = $region79
              $region76: #{mamba_block_forward.1} parent=71 // loop_body
                %v1138 = vld [vmem:[%s1136] sm:%s1127]
                %1139 = vst [vmem:[%s1137] sm:%s1127] %v1138
                %v1140 = vld [vmem:[%s1136 + $0x8] sm:%s1127]
                %1141 = vst [vmem:[%s1137 + $0x8] sm:%s1127] %v1140
                %v1142 = vld [vmem:[%s1136 + $0x10] sm:%s1127]
                %1143 = vst [vmem:[%s1137 + $0x10] sm:%s1127] %v1142
                %v1144 = vld [vmem:[%s1136 + $0x18] sm:%s1127]
                %1145 = vst [vmem:[%s1137 + $0x18] sm:%s1127] %v1144
                %v1146 = vld [vmem:[%s1136 + $0x20] sm:%s1127]
                %1147 = vst [vmem:[%s1137 + $0x20] sm:%s1127] %v1146
                %v1148 = vld [vmem:[%s1136 + $0x28] sm:%s1127]
                %1149 = vst [vmem:[%s1137 + $0x28] sm:%s1127] %v1148
                %v1150 = vld [vmem:[%s1136 + $0x30] sm:%s1127]
                %1151 = vst [vmem:[%s1137 + $0x30] sm:%s1127] %v1150
                %v1152 = vld [vmem:[%s1136 + $0x38] sm:%s1127]
                %1153 = vst [vmem:[%s1137 + $0x38] sm:%s1127] %v1152
                %v1154 = vld [vmem:[%s1136 + $0x40] sm:%s1127]
                %1155 = vst [vmem:[%s1137 + $0x40] sm:%s1127] %v1154
                %v1156 = vld [vmem:[%s1136 + $0x48] sm:%s1127]
                %1157 = vst [vmem:[%s1137 + $0x48] sm:%s1127] %v1156
                %v1158 = vld [vmem:[%s1136 + $0x50] sm:%s1127]
                %1159 = vst [vmem:[%s1137 + $0x50] sm:%s1127] %v1158
                %v1160 = vld [vmem:[%s1136 + $0x58] sm:%s1127]
                %1161 = vst [vmem:[%s1137 + $0x58] sm:%s1127] %v1160
                %v1162 = vld [vmem:[%s1136 + $0x60] sm:%s1127]
                %1163 = vst [vmem:[%s1137 + $0x60] sm:%s1127] %v1162
                %v1164 = vld [vmem:[%s1136 + $0x68] sm:%s1127]
                %1165 = vst [vmem:[%s1137 + $0x68] sm:%s1127] %v1164
                %v1166 = vld [vmem:[%s1136 + $0x70] sm:%s1127]
                %1167 = vst [vmem:[%s1137 + $0x70] sm:%s1127] %v1166
                %v1168 = vld [vmem:[%s1136 + $0x78] sm:%s1127]
                %1169 = vst [vmem:[%s1137 + $0x78] sm:%s1127] %v1168
                %s1170 = sadd.s32 1, %s1135
                %p1171 = scmp.ge.s32.totalorder %s1170, %s1128
                %s1172 = scalar_select %p1171, 0, %s1170
                %s1173 = smul.u32 %s1172, 128
                %s1174 = smul.u32 %s1172, 128
                %s1175 = scalar_lea.vmem %s1082, %s1173 [#allocation7]
                %s1176 = scalar_lea.vmem %s1118, %s1174
              $region77: #{mamba_block_forward.1} parent=71 // loop_footer
                %s1132 = sadd.s32 %s1130, 1
              $region78: #{mamba_block_forward.1} parent=71 // loop_footer_branch
                %1129 = sbr.rel target = $region74
              $region79: #{mamba_block_forward.1} parent=71 // loop_exit
                _
              %s1177 = sshrl.u32 %s1114, 4
              %s1178 = sand.u32 %s1114, 15
              %s1179 = smul.u32 %s1177, 16
              %s1180 = smul.u32 8, %s1179
              %s1181 = scalar_lea.vmem %s1082, %s1180 [#allocation7]
              %s1182 = smul.u32 8, %s1179
              %s1183 = scalar_lea.vmem %s1118, %s1182
              // While loop
              $region80: #{mamba_block_forward.1} parent=71 // loop_pre_header
                _
              $region81: #{mamba_block_forward.1} parent=71 // loop_header
                %s1185 = sphi 0, %s1187
                %p1186 = scmp.ge.s32.totalorder %s1185, %s1178
                %s1190 = sphi 0, %s1197
                %s1191 = sphi %s1181, %s1200
                %s1192 = sphi %s1183, %s1201
              $region82: #{mamba_block_forward.1} parent=71 // loop_header_branch
                %1189 = sbr.rel (%p1186) target = $region86
              $region83: #{mamba_block_forward.1} parent=71 // loop_body
                %v1193 = vld [vmem:[%s1191] sm:%s1127]
                %1194 = vst [vmem:[%s1192] sm:%s1127] %v1193
                %s1195 = sadd.s32 1, %s1190
                %p1196 = scmp.ge.s32.totalorder %s1195, %s1178
                %s1197 = scalar_select %p1196, 0, %s1195
                %s1198 = smul.u32 %s1197, 8
                %s1199 = smul.u32 %s1197, 8
                %s1200 = scalar_lea.vmem %s1181, %s1198 [#allocation7]
                %s1201 = scalar_lea.vmem %s1183, %s1199
              $region84: #{mamba_block_forward.1} parent=71 // loop_footer
                %s1187 = sadd.s32 %s1185, 1
              $region85: #{mamba_block_forward.1} parent=71 // loop_footer_branch
                %1184 = sbr.rel target = $region81
              $region86: #{mamba_block_forward.1} parent=71 // loop_exit
                _
            $region72: #{mamba_block_forward.1} parent=63 // pred_fallthru
              _
          $region64: #{mamba_block_forward.1} parent=59 // pred_fallthru
            _
          %1280 = vnop
        $region60: #{mamba_block_forward.1} parent=43 // pred_fallthru
          _
      $region44: #{mamba_block_forward.1} parent=5 // pred_fallthru
        _
      %p1281 = scmp.le.s32.totalorder 2, %s18
      // Predicated region
      $region109: #{mamba_block_forward.1} parent=5 // pred_check
        %p1282 = pneg %p1281
      $region110: #{mamba_block_forward.1} parent=5 // pred_check_branch
        %1284 = sbr.rel (%p1282) target = $region112
      $region111: #{mamba_block_forward.1} parent=5 // pred_region
        %s1285 = ssub.s32 %s18, 2
        // Predicated region
        $region113: #{mamba_block_forward.1} parent=111 // pred_check
          %p1286 = pneg %p207
        $region114: #{mamba_block_forward.1} parent=111 // pred_check_branch
          %1288 = sbr.rel (%p1286) target = $region116
        $region115: #{mamba_block_forward.1} parent=111 // pred_region
          %s1289 = sand.u32 %s192, 1
          %s1290 = scalar_lea.sflag [#allocation5], %s1289
          %s1291 = sand.u32 %s192, 1
          %s1292 = smul.addr %s1291, 128
          %s1293 = scalar_lea.vmem [#allocation6], %s1292
          %1295 = dma.done %s1290, 2048
        $region116: #{mamba_block_forward.1} parent=111 // pred_fallthru
          _
        // Predicated region
        $region117: #{mamba_block_forward.1} parent=111 // pred_check
          %p1296 = pneg %p233
        $region118: #{mamba_block_forward.1} parent=111 // pred_check_branch
          %1298 = sbr.rel (%p1296) target = $region120
        $region119: #{mamba_block_forward.1} parent=111 // pred_region
          %s1299 = sand.u32 %s218, 1
          %s1300 = sand.u32 %s218, 1
          %s1301 = smul.addr %s1300, 128
          %s1302 = scalar_lea.vmem [#allocation7], %s1301
        $region120: #{mamba_block_forward.1} parent=111 // pred_fallthru
          _
      $region112: #{mamba_block_forward.1} parent=5 // pred_fallthru
        _
    $region6: #{mamba_block_forward.1} parent=1 // loop_footer
      %s22 = sadd.s32 1, %s18
    $region7: #{mamba_block_forward.1} parent=1 // loop_footer_branch
      %17 = sbr.rel target = $region3
    $region8: #{mamba_block_forward.1} parent=1 // loop_exit
      _
    %1303 = vsyncpa [#allocation4], 1
    %s1304 = scalar_lea.sflag [#allocation4], 1
    %1305 = vsyncpa %s1304, 1
    %1306 = vsyncpa [#allocation5], 1
    %s1307 = scalar_lea.sflag [#allocation5], 1
    %1308 = vsyncpa %s1307, 1

</llo_original>
